<compile_context>
chip_gen: v7x
topology: tpu7x:2x2x1
jax: 0.10.0
libtpu: 0.0.40
codegen_flags: <defaults>
</compile_context>

<pallas_src>
import functools

import jax
import jax.numpy as jnp
from jax import lax
from jax.experimental import pallas as pl
from jax.experimental.pallas import tpu as pltpu


def _atrous_sep_conv_kernel(x_ref, wdw_ref, bdw_ref, wpw_ref, bpw_ref, o_ref,
                            xpad_ref,
                            *, C, Cout, K, stride, padding, dilation,
                            H, W, H_out, W_out):
    """One image per grid step, NCHW layout (W on the lane dim).

    x_ref    : (1, C, H, W)        VMEM input tile (unpadded)
    wdw_ref  : (C*K*K,)            SMEM depthwise weights, index c*K*K + kh*K + kw
    bdw_ref  : (C,)                SMEM depthwise bias
    wpw_ref  : (Cout*C,)           SMEM pointwise weights, index co*C + c
    bpw_ref  : (Cout,)             SMEM pointwise bias
    o_ref    : (1, Cout, H_out, W_out)
    xpad_ref : (C, H+2p, W+2p)     VMEM scratch holding the zero-padded image
    """
    # ---- in-kernel zero padding (no jnp.pad / extra HBM pass in the wrapper) ----
    if padding > 0:
        xpad_ref[...] = jnp.zeros_like(xpad_ref)
    xpad_ref[:, padding:padding + H, padding:padding + W] = x_ref[0]

    # ---- depthwise atrous conv: K*K shifted MACs per channel, acc in vregs ----
    dw = []                                    # per-channel (H_out, W_out) f32
    for c in range(C):
        # depthwise bias folded into the accumulator init (saves a full pass)
        acc = jnp.full((H_out, W_out), bdw_ref[c], jnp.float32)
        for kh in range(K):                    # K is static & small -> unrolled
            h0 = kh * dilation
            for kw in range(K):
                w0 = kw * dilation
                if stride == 1:
                    tap = xpad_ref[c, h0:h0 + H_out, w0:w0 + W_out]
                else:
                    # TODO(synk): stride>1 falls back to a strided slice (XLU
                    # shuffles); prefer handling stride at a row-tiling level.
                    win = xpad_ref[c,
                                   h0:h0 + (H_out - 1) * stride + 1,
                                   w0:w0 + (W_out - 1) * stride + 1]
                    tap = lax.slice(win, (0, 0), win.shape, (stride, stride))
                acc = acc + tap.astype(jnp.float32) * wdw_ref[c * K * K + kh * K + kw]
        dw.append(acc)

    # ---- pointwise 1x1 conv: unrolled VPU broadcast-MAC (tiny C / Cout) ----
    for co in range(Cout):
        out = jnp.full((H_out, W_out), bpw_ref[co], jnp.float32)
        for c in range(C):
            out = out + dw[c] * wpw_ref[co * C + c]
        o_ref[0, co, :, :] = out.astype(o_ref.dtype)


def atrous_separable_conv(x_nchw, w_dw, b_dw, w_pw, b_pw,
                          *, stride=1, padding=0, dilation=1):
    """Equivalent of AtrousSeparableConvolution.forward (NCHW in/out)."""
    N, C, H, W = x_nchw.shape
    Cout = w_pw.shape[0]
    K = w_dw.shape[-1]

    Hp, Wp = H + 2 * padding, W + 2 * padding
    H_out = (Hp - dilation * (K - 1) - 1) // stride + 1
    W_out = (Wp - dilation * (K - 1) - 1) // stride + 1

    # Parameter re-layouts (glue): flatten to 1-D so they live cheaply in SMEM
    # and can be read as scalars inside the kernel.
    wdw_flat = w_dw.reshape(C * K * K).astype(jnp.float32)   # (C,1,K,K) -> (C*K*K,)
    bdw = b_dw.reshape(C).astype(jnp.float32)
    wpw_flat = w_pw.reshape(Cout * C).astype(jnp.float32)    # (Cout,C,1,1) -> (Cout*C,)
    bpw = b_pw.reshape(Cout).astype(jnp.float32)

    kernel = functools.partial(_atrous_sep_conv_kernel,
                               C=C, Cout=Cout, K=K, stride=stride,
                               padding=padding, dilation=dilation,
                               H=H, W=W, H_out=H_out, W_out=W_out)

    return pl.pallas_call(
        kernel,
        out_shape=jax.ShapeDtypeStruct((N, Cout, H_out, W_out), x_nchw.dtype),
        grid_spec=pltpu.PrefetchScalarGridSpec(
            num_scalar_prefetch=0,
            grid=(N,),
            in_specs=[
                pl.BlockSpec((1, C, H, W), lambda n: (n, 0, 0, 0)),
                pl.BlockSpec(memory_space=pltpu.MemorySpace.SMEM),  # depthwise w
                pl.BlockSpec(memory_space=pltpu.MemorySpace.SMEM),  # depthwise b
                pl.BlockSpec(memory_space=pltpu.MemorySpace.SMEM),  # pointwise w
                pl.BlockSpec(memory_space=pltpu.MemorySpace.SMEM),  # pointwise b
            ],
            out_specs=pl.BlockSpec((1, Cout, H_out, W_out),
                                   lambda n: (n, 0, 0, 0)),
            scratch_shapes=[pltpu.VMEM((C, Hp, Wp), x_nchw.dtype)],
        ),
        compiler_params=pltpu.CompilerParams(
            dimension_semantics=("parallel",)),
    )(x_nchw, wdw_flat, bdw, wpw_flat, bpw)


def _reference(x, w_dw, b_dw, w_pw, b_pw, *, stride, padding, dilation):
    """Pure-JAX reference matching the PyTorch module (NCHW)."""
    C = x.shape[1]
    y = lax.conv_general_dilated(
        x, w_dw, window_strides=(stride, stride),
        padding=((padding, padding), (padding, padding)),
        rhs_dilation=(dilation, dilation),
        dimension_numbers=("NCHW", "OIHW", "NCHW"),
        feature_group_count=C)
    y = y + b_dw.reshape(1, C, 1, 1)
    z = lax.conv_general_dilated(
        y, w_pw, window_strides=(1, 1), padding=((0, 0), (0, 0)),
        dimension_numbers=("NCHW", "OIHW", "NCHW"))
    return z + b_pw.reshape(1, -1, 1, 1)


if __name__ == "__main__":
    # Module hyper-parameters (small, atrous-exercising):
    in_channels, out_channels = 4, 8
    kernel_size, stride, padding, dilation = 3, 1, 2, 2

    key = jax.random.PRNGKey(0)
    k1, k2, k3, k4, k5 = jax.random.split(key, 5)

    x = jax.random.normal(k1, (2, in_channels, 16, 16), jnp.float32)
    # Deterministic synthetic parameters (shapes match nn.Conv2d in __init__):
    w_dw = jax.random.normal(
        k2, (in_channels, 1, kernel_size, kernel_size), jnp.float32) * (1.0 / 3.0)
    b_dw = jax.random.normal(k3, (in_channels,), jnp.float32) * 0.1
    w_pw = jax.random.normal(
        k4, (out_channels, in_channels, 1, 1), jnp.float32) * 0.5
    b_pw = jax.random.normal(k5, (out_channels,), jnp.float32) * 0.1

    out = atrous_separable_conv(x, w_dw, b_dw, w_pw, b_pw,
                                stride=stride, padding=padding,
                                dilation=dilation)
    out = jax.block_until_ready(out)

    ref = _reference(x, w_dw, b_dw, w_pw, b_pw,
                     stride=stride, padding=padding, dilation=dilation)
    assert out.shape == ref.shape, (out.shape, ref.shape)
    assert jnp.allclose(out, ref, atol=1e-4, rtol=1e-4), \
        float(jnp.max(jnp.abs(out - ref)))

    print("KERNEL_OK")
</pallas_src>

<mosaic_0001>
module attributes {stable_mosaic.version = 11 : i64} {
  func.func @_atrous_sep_conv_kernel(%arg0: i32, %arg1: memref<1x4x16x16xf32, #tpu.memory_space<vmem>>, %arg2: memref<36xf32, #tpu.memory_space<smem>>, %arg3: memref<4xf32, #tpu.memory_space<smem>>, %arg4: memref<32xf32, #tpu.memory_space<smem>>, %arg5: memref<8xf32, #tpu.memory_space<smem>>, %arg6: memref<1x8x16x16xf32, #tpu.memory_space<vmem>>, %arg7: memref<4x20x20xf32, #tpu.memory_space<vmem>>) attributes {dimension_semantics = [#tpu.dimension_semantics<parallel>], iteration_bounds = array<i64: 2>, scalar_prefetch = 0 : i64, scratch_operands = 1 : i64, tpu.core_type = #tpu.core_type<tc>, window_params = [{transform_indices = @transform_0, window_bounds = array<i64: 1, 4, 16, 16>}, {transform_indices = @transform_1, window_bounds = array<i64: 36>}, {transform_indices = @transform_2, window_bounds = array<i64: 4>}, {transform_indices = @transform_3, window_bounds = array<i64: 32>}, {transform_indices = @transform_4, window_bounds = array<i64: 8>}, {transform_indices = @transform_5, window_bounds = array<i64: 1, 8, 16, 16>}]} {
    %cst = arith.constant 0.000000e+00 : f32
    %0 = vector.broadcast %cst : f32 to vector<4x20x20xf32>
    %c0 = arith.constant 0 : index
    %c0_0 = arith.constant 0 : index
    %c0_1 = arith.constant 0 : index
    %1 = vector.load %arg7[%c0, %c0_0, %c0_1] : memref<4x20x20xf32, #tpu.memory_space<vmem>>, vector<4x20x20xf32>
    tpu.vector_store %arg7[%c0, %c0_0, %c0_1], %0 {strides = array<i32>} : memref<4x20x20xf32, #tpu.memory_space<vmem>>, vector<4x20x20xf32>,
    %c0_2 = arith.constant 0 : index
    %c0_3 = arith.constant 0 : index
    %c0_4 = arith.constant 0 : index
    %c0_5 = arith.constant 0 : index
    %2 = vector.load %arg1[%c0_2, %c0_3, %c0_4, %c0_5] : memref<1x4x16x16xf32, #tpu.memory_space<vmem>>, vector<1x4x16x16xf32>
    %3 = vector.shape_cast %2 : vector<1x4x16x16xf32> to vector<4x16x16xf32>
    %c0_6 = arith.constant 0 : index
    %c2 = arith.constant 2 : index
    %c2_7 = arith.constant 2 : index
    %4 = vector.load %arg7[%c0_6, %c2, %c2_7] : memref<4x20x20xf32, #tpu.memory_space<vmem>>, vector<4x16x16xf32>
    tpu.vector_store %arg7[%c0_6, %c2, %c2_7], %3 {strides = array<i32>} : memref<4x20x20xf32, #tpu.memory_space<vmem>>, vector<4x16x16xf32>,
    %c0_8 = arith.constant 0 : index
    %5 = memref.load %arg3[%c0_8] : memref<4xf32, #tpu.memory_space<smem>>
    %6 = vector.broadcast %5 : f32 to vector<16x16xf32>
    %c0_9 = arith.constant 0 : index
    %c0_10 = arith.constant 0 : index
    %c0_11 = arith.constant 0 : index
    %7 = vector.load %arg7[%c0_9, %c0_10, %c0_11] : memref<4x20x20xf32, #tpu.memory_space<vmem>>, vector<1x16x16xf32>
    %8 = vector.shape_cast %7 : vector<1x16x16xf32> to vector<16x16xf32>
    %c0_12 = arith.constant 0 : index
    %9 = memref.load %arg2[%c0_12] : memref<36xf32, #tpu.memory_space<smem>>
    %10 = vector.broadcast %9 : f32 to vector<16x16xf32>
    %11 = arith.mulf %8, %10 : vector<16x16xf32>
    %12 = arith.addf %6, %11 : vector<16x16xf32>
    %c0_13 = arith.constant 0 : index
    %c0_14 = arith.constant 0 : index
    %c2_15 = arith.constant 2 : index
    %13 = vector.load %arg7[%c0_13, %c0_14, %c2_15] : memref<4x20x20xf32, #tpu.memory_space<vmem>>, vector<1x16x16xf32>
    %14 = vector.shape_cast %13 : vector<1x16x16xf32> to vector<16x16xf32>
    %c1 = arith.constant 1 : index
    %15 = memref.load %arg2[%c1] : memref<36xf32, #tpu.memory_space<smem>>
    %16 = vector.broadcast %15 : f32 to vector<16x16xf32>
    %17 = arith.mulf %14, %16 : vector<16x16xf32>
    %18 = arith.addf %12, %17 : vector<16x16xf32>
    %c0_16 = arith.constant 0 : index
    %c0_17 = arith.constant 0 : index
    %c4 = arith.constant 4 : index
    %19 = vector.load %arg7[%c0_16, %c0_17, %c4] : memref<4x20x20xf32, #tpu.memory_space<vmem>>, vector<1x16x16xf32>
    %20 = vector.shape_cast %19 : vector<1x16x16xf32> to vector<16x16xf32>
    %c2_18 = arith.constant 2 : index
    %21 = memref.load %arg2[%c2_18] : memref<36xf32, #tpu.memory_space<smem>>
    %22 = vector.broadcast %21 : f32 to vector<16x16xf32>
    %23 = arith.mulf %20, %22 : vector<16x16xf32>
    %24 = arith.addf %18, %23 : vector<16x16xf32>
    %c0_19 = arith.constant 0 : index
    %c2_20 = arith.constant 2 : index
    %c0_21 = arith.constant 0 : index
    %25 = vector.load %arg7[%c0_19, %c2_20, %c0_21] : memref<4x20x20xf32, #tpu.memory_space<vmem>>, vector<1x16x16xf32>
    %26 = vector.shape_cast %25 : vector<1x16x16xf32> to vector<16x16xf32>
    %c3 = arith.constant 3 : index
    %27 = memref.load %arg2[%c3] : memref<36xf32, #tpu.memory_space<smem>>
    %28 = vector.broadcast %27 : f32 to vector<16x16xf32>
    %29 = arith.mulf %26, %28 : vector<16x16xf32>
    %30 = arith.addf %24, %29 : vector<16x16xf32>
    %c0_22 = arith.constant 0 : index
    %c2_23 = arith.constant 2 : index
    %c2_24 = arith.constant 2 : index
    %31 = vector.load %arg7[%c0_22, %c2_23, %c2_24] : memref<4x20x20xf32, #tpu.memory_space<vmem>>, vector<1x16x16xf32>
    %32 = vector.shape_cast %31 : vector<1x16x16xf32> to vector<16x16xf32>
    %c4_25 = arith.constant 4 : index
    %33 = memref.load %arg2[%c4_25] : memref<36xf32, #tpu.memory_space<smem>>
    %34 = vector.broadcast %33 : f32 to vector<16x16xf32>
    %35 = arith.mulf %32, %34 : vector<16x16xf32>
    %36 = arith.addf %30, %35 : vector<16x16xf32>
    %c0_26 = arith.constant 0 : index
    %c2_27 = arith.constant 2 : index
    %c4_28 = arith.constant 4 : index
    %37 = vector.load %arg7[%c0_26, %c2_27, %c4_28] : memref<4x20x20xf32, #tpu.memory_space<vmem>>, vector<1x16x16xf32>
    %38 = vector.shape_cast %37 : vector<1x16x16xf32> to vector<16x16xf32>
    %c5 = arith.constant 5 : index
    %39 = memref.load %arg2[%c5] : memref<36xf32, #tpu.memory_space<smem>>
    %40 = vector.broadcast %39 : f32 to vector<16x16xf32>
    %41 = arith.mulf %38, %40 : vector<16x16xf32>
    %42 = arith.addf %36, %41 : vector<16x16xf32>
    %c0_29 = arith.constant 0 : index
    %c4_30 = arith.constant 4 : index
    %c0_31 = arith.constant 0 : index
    %43 = vector.load %arg7[%c0_29, %c4_30, %c0_31] : memref<4x20x20xf32, #tpu.memory_space<vmem>>, vector<1x16x16xf32>
    %44 = vector.shape_cast %43 : vector<1x16x16xf32> to vector<16x16xf32>
    %c6 = arith.constant 6 : index
    %45 = memref.load %arg2[%c6] : memref<36xf32, #tpu.memory_space<smem>>
    %46 = vector.broadcast %45 : f32 to vector<16x16xf32>
    %47 = arith.mulf %44, %46 : vector<16x16xf32>
    %48 = arith.addf %42, %47 : vector<16x16xf32>
    %c0_32 = arith.constant 0 : index
    %c4_33 = arith.constant 4 : index
    %c2_34 = arith.constant 2 : index
    %49 = vector.load %arg7[%c0_32, %c4_33, %c2_34] : memref<4x20x20xf32, #tpu.memory_space<vmem>>, vector<1x16x16xf32>
    %50 = vector.shape_cast %49 : vector<1x16x16xf32> to vector<16x16xf32>
    %c7 = arith.constant 7 : index
    %51 = memref.load %arg2[%c7] : memref<36xf32, #tpu.memory_space<smem>>
    %52 = vector.broadcast %51 : f32 to vector<16x16xf32>
    %53 = arith.mulf %50, %52 : vector<16x16xf32>
    %54 = arith.addf %48, %53 : vector<16x16xf32>
    %c0_35 = arith.constant 0 : index
    %c4_36 = arith.constant 4 : index
    %c4_37 = arith.constant 4 : index
    %55 = vector.load %arg7[%c0_35, %c4_36, %c4_37] : memref<4x20x20xf32, #tpu.memory_space<vmem>>, vector<1x16x16xf32>
    %56 = vector.shape_cast %55 : vector<1x16x16xf32> to vector<16x16xf32>
    %c8 = arith.constant 8 : index
    %57 = memref.load %arg2[%c8] : memref<36xf32, #tpu.memory_space<smem>>
    %58 = vector.broadcast %57 : f32 to vector<16x16xf32>
    %59 = arith.mulf %56, %58 : vector<16x16xf32>
    %60 = arith.addf %54, %59 : vector<16x16xf32>
    %c1_38 = arith.constant 1 : index
    %61 = memref.load %arg3[%c1_38] : memref<4xf32, #tpu.memory_space<smem>>
    %62 = vector.broadcast %61 : f32 to vector<16x16xf32>
    %c1_39 = arith.constant 1 : index
    %c0_40 = arith.constant 0 : index
    %c0_41 = arith.constant 0 : index
    %63 = vector.load %arg7[%c1_39, %c0_40, %c0_41] : memref<4x20x20xf32, #tpu.memory_space<vmem>>, vector<1x16x16xf32>
    %64 = vector.shape_cast %63 : vector<1x16x16xf32> to vector<16x16xf32>
    %c9 = arith.constant 9 : index
    %65 = memref.load %arg2[%c9] : memref<36xf32, #tpu.memory_space<smem>>
    %66 = vector.broadcast %65 : f32 to vector<16x16xf32>
    %67 = arith.mulf %64, %66 : vector<16x16xf32>
    %68 = arith.addf %62, %67 : vector<16x16xf32>
    %c1_42 = arith.constant 1 : index
    %c0_43 = arith.constant 0 : index
    %c2_44 = arith.constant 2 : index
    %69 = vector.load %arg7[%c1_42, %c0_43, %c2_44] : memref<4x20x20xf32, #tpu.memory_space<vmem>>, vector<1x16x16xf32>
    %70 = vector.shape_cast %69 : vector<1x16x16xf32> to vector<16x16xf32>
    %c10 = arith.constant 10 : index
    %71 = memref.load %arg2[%c10] : memref<36xf32, #tpu.memory_space<smem>>
    %72 = vector.broadcast %71 : f32 to vector<16x16xf32>
    %73 = arith.mulf %70, %72 : vector<16x16xf32>
    %74 = arith.addf %68, %73 : vector<16x16xf32>
    %c1_45 = arith.constant 1 : index
    %c0_46 = arith.constant 0 : index
    %c4_47 = arith.constant 4 : index
    %75 = vector.load %arg7[%c1_45, %c0_46, %c4_47] : memref<4x20x20xf32, #tpu.memory_space<vmem>>, vector<1x16x16xf32>
    %76 = vector.shape_cast %75 : vector<1x16x16xf32> to vector<16x16xf32>
    %c11 = arith.constant 11 : index
    %77 = memref.load %arg2[%c11] : memref<36xf32, #tpu.memory_space<smem>>
    %78 = vector.broadcast %77 : f32 to vector<16x16xf32>
    %79 = arith.mulf %76, %78 : vector<16x16xf32>
    %80 = arith.addf %74, %79 : vector<16x16xf32>
    %c1_48 = arith.constant 1 : index
    %c2_49 = arith.constant 2 : index
    %c0_50 = arith.constant 0 : index
    %81 = vector.load %arg7[%c1_48, %c2_49, %c0_50] : memref<4x20x20xf32, #tpu.memory_space<vmem>>, vector<1x16x16xf32>
    %82 = vector.shape_cast %81 : vector<1x16x16xf32> to vector<16x16xf32>
    %c12 = arith.constant 12 : index
    %83 = memref.load %arg2[%c12] : memref<36xf32, #tpu.memory_space<smem>>
    %84 = vector.broadcast %83 : f32 to vector<16x16xf32>
    %85 = arith.mulf %82, %84 : vector<16x16xf32>
    %86 = arith.addf %80, %85 : vector<16x16xf32>
    %c1_51 = arith.constant 1 : index
    %c2_52 = arith.constant 2 : index
    %c2_53 = arith.constant 2 : index
    %87 = vector.load %arg7[%c1_51, %c2_52, %c2_53] : memref<4x20x20xf32, #tpu.memory_space<vmem>>, vector<1x16x16xf32>
    %88 = vector.shape_cast %87 : vector<1x16x16xf32> to vector<16x16xf32>
    %c13 = arith.constant 13 : index
    %89 = memref.load %arg2[%c13] : memref<36xf32, #tpu.memory_space<smem>>
    %90 = vector.broadcast %89 : f32 to vector<16x16xf32>
    %91 = arith.mulf %88, %90 : vector<16x16xf32>
    %92 = arith.addf %86, %91 : vector<16x16xf32>
    %c1_54 = arith.constant 1 : index
    %c2_55 = arith.constant 2 : index
    %c4_56 = arith.constant 4 : index
    %93 = vector.load %arg7[%c1_54, %c2_55, %c4_56] : memref<4x20x20xf32, #tpu.memory_space<vmem>>, vector<1x16x16xf32>
    %94 = vector.shape_cast %93 : vector<1x16x16xf32> to vector<16x16xf32>
    %c14 = arith.constant 14 : index
    %95 = memref.load %arg2[%c14] : memref<36xf32, #tpu.memory_space<smem>>
    %96 = vector.broadcast %95 : f32 to vector<16x16xf32>
    %97 = arith.mulf %94, %96 : vector<16x16xf32>
    %98 = arith.addf %92, %97 : vector<16x16xf32>
    %c1_57 = arith.constant 1 : index
    %c4_58 = arith.constant 4 : index
    %c0_59 = arith.constant 0 : index
    %99 = vector.load %arg7[%c1_57, %c4_58, %c0_59] : memref<4x20x20xf32, #tpu.memory_space<vmem>>, vector<1x16x16xf32>
    %100 = vector.shape_cast %99 : vector<1x16x16xf32> to vector<16x16xf32>
    %c15 = arith.constant 15 : index
    %101 = memref.load %arg2[%c15] : memref<36xf32, #tpu.memory_space<smem>>
    %102 = vector.broadcast %101 : f32 to vector<16x16xf32>
    %103 = arith.mulf %100, %102 : vector<16x16xf32>
    %104 = arith.addf %98, %103 : vector<16x16xf32>
    %c1_60 = arith.constant 1 : index
    %c4_61 = arith.constant 4 : index
    %c2_62 = arith.constant 2 : index
    %105 = vector.load %arg7[%c1_60, %c4_61, %c2_62] : memref<4x20x20xf32, #tpu.memory_space<vmem>>, vector<1x16x16xf32>
    %106 = vector.shape_cast %105 : vector<1x16x16xf32> to vector<16x16xf32>
    %c16 = arith.constant 16 : index
    %107 = memref.load %arg2[%c16] : memref<36xf32, #tpu.memory_space<smem>>
    %108 = vector.broadcast %107 : f32 to vector<16x16xf32>
    %109 = arith.mulf %106, %108 : vector<16x16xf32>
    %110 = arith.addf %104, %109 : vector<16x16xf32>
    %c1_63 = arith.constant 1 : index
    %c4_64 = arith.constant 4 : index
    %c4_65 = arith.constant 4 : index
    %111 = vector.load %arg7[%c1_63, %c4_64, %c4_65] : memref<4x20x20xf32, #tpu.memory_space<vmem>>, vector<1x16x16xf32>
    %112 = vector.shape_cast %111 : vector<1x16x16xf32> to vector<16x16xf32>
    %c17 = arith.constant 17 : index
    %113 = memref.load %arg2[%c17] : memref<36xf32, #tpu.memory_space<smem>>
    %114 = vector.broadcast %113 : f32 to vector<16x16xf32>
    %115 = arith.mulf %112, %114 : vector<16x16xf32>
    %116 = arith.addf %110, %115 : vector<16x16xf32>
    %c2_66 = arith.constant 2 : index
    %117 = memref.load %arg3[%c2_66] : memref<4xf32, #tpu.memory_space<smem>>
    %118 = vector.broadcast %117 : f32 to vector<16x16xf32>
    %c2_67 = arith.constant 2 : index
    %c0_68 = arith.constant 0 : index
    %c0_69 = arith.constant 0 : index
    %119 = vector.load %arg7[%c2_67, %c0_68, %c0_69] : memref<4x20x20xf32, #tpu.memory_space<vmem>>, vector<1x16x16xf32>
    %120 = vector.shape_cast %119 : vector<1x16x16xf32> to vector<16x16xf32>
    %c18 = arith.constant 18 : index
    %121 = memref.load %arg2[%c18] : memref<36xf32, #tpu.memory_space<smem>>
    %122 = vector.broadcast %121 : f32 to vector<16x16xf32>
    %123 = arith.mulf %120, %122 : vector<16x16xf32>
    %124 = arith.addf %118, %123 : vector<16x16xf32>
    %c2_70 = arith.constant 2 : index
    %c0_71 = arith.constant 0 : index
    %c2_72 = arith.constant 2 : index
    %125 = vector.load %arg7[%c2_70, %c0_71, %c2_72] : memref<4x20x20xf32, #tpu.memory_space<vmem>>, vector<1x16x16xf32>
    %126 = vector.shape_cast %125 : vector<1x16x16xf32> to vector<16x16xf32>
    %c19 = arith.constant 19 : index
    %127 = memref.load %arg2[%c19] : memref<36xf32, #tpu.memory_space<smem>>
    %128 = vector.broadcast %127 : f32 to vector<16x16xf32>
    %129 = arith.mulf %126, %128 : vector<16x16xf32>
    %130 = arith.addf %124, %129 : vector<16x16xf32>
    %c2_73 = arith.constant 2 : index
    %c0_74 = arith.constant 0 : index
    %c4_75 = arith.constant 4 : index
    %131 = vector.load %arg7[%c2_73, %c0_74, %c4_75] : memref<4x20x20xf32, #tpu.memory_space<vmem>>, vector<1x16x16xf32>
    %132 = vector.shape_cast %131 : vector<1x16x16xf32> to vector<16x16xf32>
    %c20 = arith.constant 20 : index
    %133 = memref.load %arg2[%c20] : memref<36xf32, #tpu.memory_space<smem>>
    %134 = vector.broadcast %133 : f32 to vector<16x16xf32>
    %135 = arith.mulf %132, %134 : vector<16x16xf32>
    %136 = arith.addf %130, %135 : vector<16x16xf32>
    %c2_76 = arith.constant 2 : index
    %c2_77 = arith.constant 2 : index
    %c0_78 = arith.constant 0 : index
    %137 = vector.load %arg7[%c2_76, %c2_77, %c0_78] : memref<4x20x20xf32, #tpu.memory_space<vmem>>, vector<1x16x16xf32>
    %138 = vector.shape_cast %137 : vector<1x16x16xf32> to vector<16x16xf32>
    %c21 = arith.constant 21 : index
    %139 = memref.load %arg2[%c21] : memref<36xf32, #tpu.memory_space<smem>>
    %140 = vector.broadcast %139 : f32 to vector<16x16xf32>
    %141 = arith.mulf %138, %140 : vector<16x16xf32>
    %142 = arith.addf %136, %141 : vector<16x16xf32>
    %c2_79 = arith.constant 2 : index
    %c2_80 = arith.constant 2 : index
    %c2_81 = arith.constant 2 : index
    %143 = vector.load %arg7[%c2_79, %c2_80, %c2_81] : memref<4x20x20xf32, #tpu.memory_space<vmem>>, vector<1x16x16xf32>
    %144 = vector.shape_cast %143 : vector<1x16x16xf32> to vector<16x16xf32>
    %c22 = arith.constant 22 : index
    %145 = memref.load %arg2[%c22] : memref<36xf32, #tpu.memory_space<smem>>
    %146 = vector.broadcast %145 : f32 to vector<16x16xf32>
    %147 = arith.mulf %144, %146 : vector<16x16xf32>
    %148 = arith.addf %142, %147 : vector<16x16xf32>
    %c2_82 = arith.constant 2 : index
    %c2_83 = arith.constant 2 : index
    %c4_84 = arith.constant 4 : index
    %149 = vector.load %arg7[%c2_82, %c2_83, %c4_84] : memref<4x20x20xf32, #tpu.memory_space<vmem>>, vector<1x16x16xf32>
    %150 = vector.shape_cast %149 : vector<1x16x16xf32> to vector<16x16xf32>
    %c23 = arith.constant 23 : index
    %151 = memref.load %arg2[%c23] : memref<36xf32, #tpu.memory_space<smem>>
    %152 = vector.broadcast %151 : f32 to vector<16x16xf32>
    %153 = arith.mulf %150, %152 : vector<16x16xf32>
    %154 = arith.addf %148, %153 : vector<16x16xf32>
    %c2_85 = arith.constant 2 : index
    %c4_86 = arith.constant 4 : index
    %c0_87 = arith.constant 0 : index
    %155 = vector.load %arg7[%c2_85, %c4_86, %c0_87] : memref<4x20x20xf32, #tpu.memory_space<vmem>>, vector<1x16x16xf32>
    %156 = vector.shape_cast %155 : vector<1x16x16xf32> to vector<16x16xf32>
    %c24 = arith.constant 24 : index
    %157 = memref.load %arg2[%c24] : memref<36xf32, #tpu.memory_space<smem>>
    %158 = vector.broadcast %157 : f32 to vector<16x16xf32>
    %159 = arith.mulf %156, %158 : vector<16x16xf32>
    %160 = arith.addf %154, %159 : vector<16x16xf32>
    %c2_88 = arith.constant 2 : index
    %c4_89 = arith.constant 4 : index
    %c2_90 = arith.constant 2 : index
    %161 = vector.load %arg7[%c2_88, %c4_89, %c2_90] : memref<4x20x20xf32, #tpu.memory_space<vmem>>, vector<1x16x16xf32>
    %162 = vector.shape_cast %161 : vector<1x16x16xf32> to vector<16x16xf32>
    %c25 = arith.constant 25 : index
    %163 = memref.load %arg2[%c25] : memref<36xf32, #tpu.memory_space<smem>>
    %164 = vector.broadcast %163 : f32 to vector<16x16xf32>
    %165 = arith.mulf %162, %164 : vector<16x16xf32>
    %166 = arith.addf %160, %165 : vector<16x16xf32>
    %c2_91 = arith.constant 2 : index
    %c4_92 = arith.constant 4 : index
    %c4_93 = arith.constant 4 : index
    %167 = vector.load %arg7[%c2_91, %c4_92, %c4_93] : memref<4x20x20xf32, #tpu.memory_space<vmem>>, vector<1x16x16xf32>
    %168 = vector.shape_cast %167 : vector<1x16x16xf32> to vector<16x16xf32>
    %c26 = arith.constant 26 : index
    %169 = memref.load %arg2[%c26] : memref<36xf32, #tpu.memory_space<smem>>
    %170 = vector.broadcast %169 : f32 to vector<16x16xf32>
    %171 = arith.mulf %168, %170 : vector<16x16xf32>
    %172 = arith.addf %166, %171 : vector<16x16xf32>
    %c3_94 = arith.constant 3 : index
    %173 = memref.load %arg3[%c3_94] : memref<4xf32, #tpu.memory_space<smem>>
    %174 = vector.broadcast %173 : f32 to vector<16x16xf32>
    %c3_95 = arith.constant 3 : index
    %c0_96 = arith.constant 0 : index
    %c0_97 = arith.constant 0 : index
    %175 = vector.load %arg7[%c3_95, %c0_96, %c0_97] : memref<4x20x20xf32, #tpu.memory_space<vmem>>, vector<1x16x16xf32>
    %176 = vector.shape_cast %175 : vector<1x16x16xf32> to vector<16x16xf32>
    %c27 = arith.constant 27 : index
    %177 = memref.load %arg2[%c27] : memref<36xf32, #tpu.memory_space<smem>>
    %178 = vector.broadcast %177 : f32 to vector<16x16xf32>
    %179 = arith.mulf %176, %178 : vector<16x16xf32>
    %180 = arith.addf %174, %179 : vector<16x16xf32>
    %c3_98 = arith.constant 3 : index
    %c0_99 = arith.constant 0 : index
    %c2_100 = arith.constant 2 : index
    %181 = vector.load %arg7[%c3_98, %c0_99, %c2_100] : memref<4x20x20xf32, #tpu.memory_space<vmem>>, vector<1x16x16xf32>
    %182 = vector.shape_cast %181 : vector<1x16x16xf32> to vector<16x16xf32>
    %c28 = arith.constant 28 : index
    %183 = memref.load %arg2[%c28] : memref<36xf32, #tpu.memory_space<smem>>
    %184 = vector.broadcast %183 : f32 to vector<16x16xf32>
    %185 = arith.mulf %182, %184 : vector<16x16xf32>
    %186 = arith.addf %180, %185 : vector<16x16xf32>
    %c3_101 = arith.constant 3 : index
    %c0_102 = arith.constant 0 : index
    %c4_103 = arith.constant 4 : index
    %187 = vector.load %arg7[%c3_101, %c0_102, %c4_103] : memref<4x20x20xf32, #tpu.memory_space<vmem>>, vector<1x16x16xf32>
    %188 = vector.shape_cast %187 : vector<1x16x16xf32> to vector<16x16xf32>
    %c29 = arith.constant 29 : index
    %189 = memref.load %arg2[%c29] : memref<36xf32, #tpu.memory_space<smem>>
    %190 = vector.broadcast %189 : f32 to vector<16x16xf32>
    %191 = arith.mulf %188, %190 : vector<16x16xf32>
    %192 = arith.addf %186, %191 : vector<16x16xf32>
    %c3_104 = arith.constant 3 : index
    %c2_105 = arith.constant 2 : index
    %c0_106 = arith.constant 0 : index
    %193 = vector.load %arg7[%c3_104, %c2_105, %c0_106] : memref<4x20x20xf32, #tpu.memory_space<vmem>>, vector<1x16x16xf32>
    %194 = vector.shape_cast %193 : vector<1x16x16xf32> to vector<16x16xf32>
    %c30 = arith.constant 30 : index
    %195 = memref.load %arg2[%c30] : memref<36xf32, #tpu.memory_space<smem>>
    %196 = vector.broadcast %195 : f32 to vector<16x16xf32>
    %197 = arith.mulf %194, %196 : vector<16x16xf32>
    %198 = arith.addf %192, %197 : vector<16x16xf32>
    %c3_107 = arith.constant 3 : index
    %c2_108 = arith.constant 2 : index
    %c2_109 = arith.constant 2 : index
    %199 = vector.load %arg7[%c3_107, %c2_108, %c2_109] : memref<4x20x20xf32, #tpu.memory_space<vmem>>, vector<1x16x16xf32>
    %200 = vector.shape_cast %199 : vector<1x16x16xf32> to vector<16x16xf32>
    %c31 = arith.constant 31 : index
    %201 = memref.load %arg2[%c31] : memref<36xf32, #tpu.memory_space<smem>>
    %202 = vector.broadcast %201 : f32 to vector<16x16xf32>
    %203 = arith.mulf %200, %202 : vector<16x16xf32>
    %204 = arith.addf %198, %203 : vector<16x16xf32>
    %c3_110 = arith.constant 3 : index
    %c2_111 = arith.constant 2 : index
    %c4_112 = arith.constant 4 : index
    %205 = vector.load %arg7[%c3_110, %c2_111, %c4_112] : memref<4x20x20xf32, #tpu.memory_space<vmem>>, vector<1x16x16xf32>
    %206 = vector.shape_cast %205 : vector<1x16x16xf32> to vector<16x16xf32>
    %c32 = arith.constant 32 : index
    %207 = memref.load %arg2[%c32] : memref<36xf32, #tpu.memory_space<smem>>
    %208 = vector.broadcast %207 : f32 to vector<16x16xf32>
    %209 = arith.mulf %206, %208 : vector<16x16xf32>
    %210 = arith.addf %204, %209 : vector<16x16xf32>
    %c3_113 = arith.constant 3 : index
    %c4_114 = arith.constant 4 : index
    %c0_115 = arith.constant 0 : index
    %211 = vector.load %arg7[%c3_113, %c4_114, %c0_115] : memref<4x20x20xf32, #tpu.memory_space<vmem>>, vector<1x16x16xf32>
    %212 = vector.shape_cast %211 : vector<1x16x16xf32> to vector<16x16xf32>
    %c33 = arith.constant 33 : index
    %213 = memref.load %arg2[%c33] : memref<36xf32, #tpu.memory_space<smem>>
    %214 = vector.broadcast %213 : f32 to vector<16x16xf32>
    %215 = arith.mulf %212, %214 : vector<16x16xf32>
    %216 = arith.addf %210, %215 : vector<16x16xf32>
    %c3_116 = arith.constant 3 : index
    %c4_117 = arith.constant 4 : index
    %c2_118 = arith.constant 2 : index
    %217 = vector.load %arg7[%c3_116, %c4_117, %c2_118] : memref<4x20x20xf32, #tpu.memory_space<vmem>>, vector<1x16x16xf32>
    %218 = vector.shape_cast %217 : vector<1x16x16xf32> to vector<16x16xf32>
    %c34 = arith.constant 34 : index
    %219 = memref.load %arg2[%c34] : memref<36xf32, #tpu.memory_space<smem>>
    %220 = vector.broadcast %219 : f32 to vector<16x16xf32>
    %221 = arith.mulf %218, %220 : vector<16x16xf32>
    %222 = arith.addf %216, %221 : vector<16x16xf32>
    %c3_119 = arith.constant 3 : index
    %c4_120 = arith.constant 4 : index
    %c4_121 = arith.constant 4 : index
    %223 = vector.load %arg7[%c3_119, %c4_120, %c4_121] : memref<4x20x20xf32, #tpu.memory_space<vmem>>, vector<1x16x16xf32>
    %224 = vector.shape_cast %223 : vector<1x16x16xf32> to vector<16x16xf32>
    %c35 = arith.constant 35 : index
    %225 = memref.load %arg2[%c35] : memref<36xf32, #tpu.memory_space<smem>>
    %226 = vector.broadcast %225 : f32 to vector<16x16xf32>
    %227 = arith.mulf %224, %226 : vector<16x16xf32>
    %228 = arith.addf %222, %227 : vector<16x16xf32>
    %c0_122 = arith.constant 0 : index
    %229 = memref.load %arg5[%c0_122] : memref<8xf32, #tpu.memory_space<smem>>
    %230 = vector.broadcast %229 : f32 to vector<16x16xf32>
    %c0_123 = arith.constant 0 : index
    %231 = memref.load %arg4[%c0_123] : memref<32xf32, #tpu.memory_space<smem>>
    %232 = vector.broadcast %231 : f32 to vector<16x16xf32>
    %233 = arith.mulf %60, %232 : vector<16x16xf32>
    %234 = arith.addf %230, %233 : vector<16x16xf32>
    %c1_124 = arith.constant 1 : index
    %235 = memref.load %arg4[%c1_124] : memref<32xf32, #tpu.memory_space<smem>>
    %236 = vector.broadcast %235 : f32 to vector<16x16xf32>
    %237 = arith.mulf %116, %236 : vector<16x16xf32>
    %238 = arith.addf %234, %237 : vector<16x16xf32>
    %c2_125 = arith.constant 2 : index
    %239 = memref.load %arg4[%c2_125] : memref<32xf32, #tpu.memory_space<smem>>
    %240 = vector.broadcast %239 : f32 to vector<16x16xf32>
    %241 = arith.mulf %172, %240 : vector<16x16xf32>
    %242 = arith.addf %238, %241 : vector<16x16xf32>
    %c3_126 = arith.constant 3 : index
    %243 = memref.load %arg4[%c3_126] : memref<32xf32, #tpu.memory_space<smem>>
    %244 = vector.broadcast %243 : f32 to vector<16x16xf32>
    %245 = arith.mulf %228, %244 : vector<16x16xf32>
    %246 = arith.addf %242, %245 : vector<16x16xf32>
    %c0_127 = arith.constant 0 : index
    %c0_128 = arith.constant 0 : index
    %c0_129 = arith.constant 0 : index
    %c0_130 = arith.constant 0 : index
    %247 = vector.load %arg6[%c0_127, %c0_128, %c0_129, %c0_130] : memref<1x8x16x16xf32, #tpu.memory_space<vmem>>, vector<1x1x16x16xf32>
    %248 = vector.shape_cast %247 : vector<1x1x16x16xf32> to vector<16x16xf32>
    %249 = vector.shape_cast %246 : vector<16x16xf32> to vector<1x1x16x16xf32>
    tpu.vector_store %arg6[%c0_127, %c0_128, %c0_129, %c0_130], %249 {strides = array<i32>} : memref<1x8x16x16xf32, #tpu.memory_space<vmem>>, vector<1x1x16x16xf32>,
    %c1_131 = arith.constant 1 : index
    %250 = memref.load %arg5[%c1_131] : memref<8xf32, #tpu.memory_space<smem>>
    %251 = vector.broadcast %250 : f32 to vector<16x16xf32>
    %c4_132 = arith.constant 4 : index
    %252 = memref.load %arg4[%c4_132] : memref<32xf32, #tpu.memory_space<smem>>
    %253 = vector.broadcast %252 : f32 to vector<16x16xf32>
    %254 = arith.mulf %60, %253 : vector<16x16xf32>
    %255 = arith.addf %251, %254 : vector<16x16xf32>
    %c5_133 = arith.constant 5 : index
    %256 = memref.load %arg4[%c5_133] : memref<32xf32, #tpu.memory_space<smem>>
    %257 = vector.broadcast %256 : f32 to vector<16x16xf32>
    %258 = arith.mulf %116, %257 : vector<16x16xf32>
    %259 = arith.addf %255, %258 : vector<16x16xf32>
    %c6_134 = arith.constant 6 : index
    %260 = memref.load %arg4[%c6_134] : memref<32xf32, #tpu.memory_space<smem>>
    %261 = vector.broadcast %260 : f32 to vector<16x16xf32>
    %262 = arith.mulf %172, %261 : vector<16x16xf32>
    %263 = arith.addf %259, %262 : vector<16x16xf32>
    %c7_135 = arith.constant 7 : index
    %264 = memref.load %arg4[%c7_135] : memref<32xf32, #tpu.memory_space<smem>>
    %265 = vector.broadcast %264 : f32 to vector<16x16xf32>
    %266 = arith.mulf %228, %265 : vector<16x16xf32>
    %267 = arith.addf %263, %266 : vector<16x16xf32>
    %c0_136 = arith.constant 0 : index
    %c1_137 = arith.constant 1 : index
    %c0_138 = arith.constant 0 : index
    %c0_139 = arith.constant 0 : index
    %268 = vector.load %arg6[%c0_136, %c1_137, %c0_138, %c0_139] : memref<1x8x16x16xf32, #tpu.memory_space<vmem>>, vector<1x1x16x16xf32>
    %269 = vector.shape_cast %268 : vector<1x1x16x16xf32> to vector<16x16xf32>
    %270 = vector.shape_cast %267 : vector<16x16xf32> to vector<1x1x16x16xf32>
    tpu.vector_store %arg6[%c0_136, %c1_137, %c0_138, %c0_139], %270 {strides = array<i32>} : memref<1x8x16x16xf32, #tpu.memory_space<vmem>>, vector<1x1x16x16xf32>,
    %c2_140 = arith.constant 2 : index
    %271 = memref.load %arg5[%c2_140] : memref<8xf32, #tpu.memory_space<smem>>
    %272 = vector.broadcast %271 : f32 to vector<16x16xf32>
    %c8_141 = arith.constant 8 : index
    %273 = memref.load %arg4[%c8_141] : memref<32xf32, #tpu.memory_space<smem>>
    %274 = vector.broadcast %273 : f32 to vector<16x16xf32>
    %275 = arith.mulf %60, %274 : vector<16x16xf32>
    %276 = arith.addf %272, %275 : vector<16x16xf32>
    %c9_142 = arith.constant 9 : index
    %277 = memref.load %arg4[%c9_142] : memref<32xf32, #tpu.memory_space<smem>>
    %278 = vector.broadcast %277 : f32 to vector<16x16xf32>
    %279 = arith.mulf %116, %278 : vector<16x16xf32>
    %280 = arith.addf %276, %279 : vector<16x16xf32>
    %c10_143 = arith.constant 10 : index
    %281 = memref.load %arg4[%c10_143] : memref<32xf32, #tpu.memory_space<smem>>
    %282 = vector.broadcast %281 : f32 to vector<16x16xf32>
    %283 = arith.mulf %172, %282 : vector<16x16xf32>
    %284 = arith.addf %280, %283 : vector<16x16xf32>
    %c11_144 = arith.constant 11 : index
    %285 = memref.load %arg4[%c11_144] : memref<32xf32, #tpu.memory_space<smem>>
    %286 = vector.broadcast %285 : f32 to vector<16x16xf32>
    %287 = arith.mulf %228, %286 : vector<16x16xf32>
    %288 = arith.addf %284, %287 : vector<16x16xf32>
    %c0_145 = arith.constant 0 : index
    %c2_146 = arith.constant 2 : index
    %c0_147 = arith.constant 0 : index
    %c0_148 = arith.constant 0 : index
    %289 = vector.load %arg6[%c0_145, %c2_146, %c0_147, %c0_148] : memref<1x8x16x16xf32, #tpu.memory_space<vmem>>, vector<1x1x16x16xf32>
    %290 = vector.shape_cast %289 : vector<1x1x16x16xf32> to vector<16x16xf32>
    %291 = vector.shape_cast %288 : vector<16x16xf32> to vector<1x1x16x16xf32>
    tpu.vector_store %arg6[%c0_145, %c2_146, %c0_147, %c0_148], %291 {strides = array<i32>} : memref<1x8x16x16xf32, #tpu.memory_space<vmem>>, vector<1x1x16x16xf32>,
    %c3_149 = arith.constant 3 : index
    %292 = memref.load %arg5[%c3_149] : memref<8xf32, #tpu.memory_space<smem>>
    %293 = vector.broadcast %292 : f32 to vector<16x16xf32>
    %c12_150 = arith.constant 12 : index
    %294 = memref.load %arg4[%c12_150] : memref<32xf32, #tpu.memory_space<smem>>
    %295 = vector.broadcast %294 : f32 to vector<16x16xf32>
    %296 = arith.mulf %60, %295 : vector<16x16xf32>
    %297 = arith.addf %293, %296 : vector<16x16xf32>
    %c13_151 = arith.constant 13 : index
    %298 = memref.load %arg4[%c13_151] : memref<32xf32, #tpu.memory_space<smem>>
    %299 = vector.broadcast %298 : f32 to vector<16x16xf32>
    %300 = arith.mulf %116, %299 : vector<16x16xf32>
    %301 = arith.addf %297, %300 : vector<16x16xf32>
    %c14_152 = arith.constant 14 : index
    %302 = memref.load %arg4[%c14_152] : memref<32xf32, #tpu.memory_space<smem>>
    %303 = vector.broadcast %302 : f32 to vector<16x16xf32>
    %304 = arith.mulf %172, %303 : vector<16x16xf32>
    %305 = arith.addf %301, %304 : vector<16x16xf32>
    %c15_153 = arith.constant 15 : index
    %306 = memref.load %arg4[%c15_153] : memref<32xf32, #tpu.memory_space<smem>>
    %307 = vector.broadcast %306 : f32 to vector<16x16xf32>
    %308 = arith.mulf %228, %307 : vector<16x16xf32>
    %309 = arith.addf %305, %308 : vector<16x16xf32>
    %c0_154 = arith.constant 0 : index
    %c3_155 = arith.constant 3 : index
    %c0_156 = arith.constant 0 : index
    %c0_157 = arith.constant 0 : index
    %310 = vector.load %arg6[%c0_154, %c3_155, %c0_156, %c0_157] : memref<1x8x16x16xf32, #tpu.memory_space<vmem>>, vector<1x1x16x16xf32>
    %311 = vector.shape_cast %310 : vector<1x1x16x16xf32> to vector<16x16xf32>
    %312 = vector.shape_cast %309 : vector<16x16xf32> to vector<1x1x16x16xf32>
    tpu.vector_store %arg6[%c0_154, %c3_155, %c0_156, %c0_157], %312 {strides = array<i32>} : memref<1x8x16x16xf32, #tpu.memory_space<vmem>>, vector<1x1x16x16xf32>,
    %c4_158 = arith.constant 4 : index
    %313 = memref.load %arg5[%c4_158] : memref<8xf32, #tpu.memory_space<smem>>
    %314 = vector.broadcast %313 : f32 to vector<16x16xf32>
    %c16_159 = arith.constant 16 : index
    %315 = memref.load %arg4[%c16_159] : memref<32xf32, #tpu.memory_space<smem>>
    %316 = vector.broadcast %315 : f32 to vector<16x16xf32>
    %317 = arith.mulf %60, %316 : vector<16x16xf32>
    %318 = arith.addf %314, %317 : vector<16x16xf32>
    %c17_160 = arith.constant 17 : index
    %319 = memref.load %arg4[%c17_160] : memref<32xf32, #tpu.memory_space<smem>>
    %320 = vector.broadcast %319 : f32 to vector<16x16xf32>
    %321 = arith.mulf %116, %320 : vector<16x16xf32>
    %322 = arith.addf %318, %321 : vector<16x16xf32>
    %c18_161 = arith.constant 18 : index
    %323 = memref.load %arg4[%c18_161] : memref<32xf32, #tpu.memory_space<smem>>
    %324 = vector.broadcast %323 : f32 to vector<16x16xf32>
    %325 = arith.mulf %172, %324 : vector<16x16xf32>
    %326 = arith.addf %322, %325 : vector<16x16xf32>
    %c19_162 = arith.constant 19 : index
    %327 = memref.load %arg4[%c19_162] : memref<32xf32, #tpu.memory_space<smem>>
    %328 = vector.broadcast %327 : f32 to vector<16x16xf32>
    %329 = arith.mulf %228, %328 : vector<16x16xf32>
    %330 = arith.addf %326, %329 : vector<16x16xf32>
    %c0_163 = arith.constant 0 : index
    %c4_164 = arith.constant 4 : index
    %c0_165 = arith.constant 0 : index
    %c0_166 = arith.constant 0 : index
    %331 = vector.load %arg6[%c0_163, %c4_164, %c0_165, %c0_166] : memref<1x8x16x16xf32, #tpu.memory_space<vmem>>, vector<1x1x16x16xf32>
    %332 = vector.shape_cast %331 : vector<1x1x16x16xf32> to vector<16x16xf32>
    %333 = vector.shape_cast %330 : vector<16x16xf32> to vector<1x1x16x16xf32>
    tpu.vector_store %arg6[%c0_163, %c4_164, %c0_165, %c0_166], %333 {strides = array<i32>} : memref<1x8x16x16xf32, #tpu.memory_space<vmem>>, vector<1x1x16x16xf32>,
    %c5_167 = arith.constant 5 : index
    %334 = memref.load %arg5[%c5_167] : memref<8xf32, #tpu.memory_space<smem>>
    %335 = vector.broadcast %334 : f32 to vector<16x16xf32>
    %c20_168 = arith.constant 20 : index
    %336 = memref.load %arg4[%c20_168] : memref<32xf32, #tpu.memory_space<smem>>
    %337 = vector.broadcast %336 : f32 to vector<16x16xf32>
    %338 = arith.mulf %60, %337 : vector<16x16xf32>
    %339 = arith.addf %335, %338 : vector<16x16xf32>
    %c21_169 = arith.constant 21 : index
    %340 = memref.load %arg4[%c21_169] : memref<32xf32, #tpu.memory_space<smem>>
    %341 = vector.broadcast %340 : f32 to vector<16x16xf32>
    %342 = arith.mulf %116, %341 : vector<16x16xf32>
    %343 = arith.addf %339, %342 : vector<16x16xf32>
    %c22_170 = arith.constant 22 : index
    %344 = memref.load %arg4[%c22_170] : memref<32xf32, #tpu.memory_space<smem>>
    %345 = vector.broadcast %344 : f32 to vector<16x16xf32>
    %346 = arith.mulf %172, %345 : vector<16x16xf32>
    %347 = arith.addf %343, %346 : vector<16x16xf32>
    %c23_171 = arith.constant 23 : index
    %348 = memref.load %arg4[%c23_171] : memref<32xf32, #tpu.memory_space<smem>>
    %349 = vector.broadcast %348 : f32 to vector<16x16xf32>
    %350 = arith.mulf %228, %349 : vector<16x16xf32>
    %351 = arith.addf %347, %350 : vector<16x16xf32>
    %c0_172 = arith.constant 0 : index
    %c5_173 = arith.constant 5 : index
    %c0_174 = arith.constant 0 : index
    %c0_175 = arith.constant 0 : index
    %352 = vector.load %arg6[%c0_172, %c5_173, %c0_174, %c0_175] : memref<1x8x16x16xf32, #tpu.memory_space<vmem>>, vector<1x1x16x16xf32>
    %353 = vector.shape_cast %352 : vector<1x1x16x16xf32> to vector<16x16xf32>
    %354 = vector.shape_cast %351 : vector<16x16xf32> to vector<1x1x16x16xf32>
    tpu.vector_store %arg6[%c0_172, %c5_173, %c0_174, %c0_175], %354 {strides = array<i32>} : memref<1x8x16x16xf32, #tpu.memory_space<vmem>>, vector<1x1x16x16xf32>,
    %c6_176 = arith.constant 6 : index
    %355 = memref.load %arg5[%c6_176] : memref<8xf32, #tpu.memory_space<smem>>
    %356 = vector.broadcast %355 : f32 to vector<16x16xf32>
    %c24_177 = arith.constant 24 : index
    %357 = memref.load %arg4[%c24_177] : memref<32xf32, #tpu.memory_space<smem>>
    %358 = vector.broadcast %357 : f32 to vector<16x16xf32>
    %359 = arith.mulf %60, %358 : vector<16x16xf32>
    %360 = arith.addf %356, %359 : vector<16x16xf32>
    %c25_178 = arith.constant 25 : index
    %361 = memref.load %arg4[%c25_178] : memref<32xf32, #tpu.memory_space<smem>>
    %362 = vector.broadcast %361 : f32 to vector<16x16xf32>
    %363 = arith.mulf %116, %362 : vector<16x16xf32>
    %364 = arith.addf %360, %363 : vector<16x16xf32>
    %c26_179 = arith.constant 26 : index
    %365 = memref.load %arg4[%c26_179] : memref<32xf32, #tpu.memory_space<smem>>
    %366 = vector.broadcast %365 : f32 to vector<16x16xf32>
    %367 = arith.mulf %172, %366 : vector<16x16xf32>
    %368 = arith.addf %364, %367 : vector<16x16xf32>
    %c27_180 = arith.constant 27 : index
    %369 = memref.load %arg4[%c27_180] : memref<32xf32, #tpu.memory_space<smem>>
    %370 = vector.broadcast %369 : f32 to vector<16x16xf32>
    %371 = arith.mulf %228, %370 : vector<16x16xf32>
    %372 = arith.addf %368, %371 : vector<16x16xf32>
    %c0_181 = arith.constant 0 : index
    %c6_182 = arith.constant 6 : index
    %c0_183 = arith.constant 0 : index
    %c0_184 = arith.constant 0 : index
    %373 = vector.load %arg6[%c0_181, %c6_182, %c0_183, %c0_184] : memref<1x8x16x16xf32, #tpu.memory_space<vmem>>, vector<1x1x16x16xf32>
    %374 = vector.shape_cast %373 : vector<1x1x16x16xf32> to vector<16x16xf32>
    %375 = vector.shape_cast %372 : vector<16x16xf32> to vector<1x1x16x16xf32>
    tpu.vector_store %arg6[%c0_181, %c6_182, %c0_183, %c0_184], %375 {strides = array<i32>} : memref<1x8x16x16xf32, #tpu.memory_space<vmem>>, vector<1x1x16x16xf32>,
    %c7_185 = arith.constant 7 : index
    %376 = memref.load %arg5[%c7_185] : memref<8xf32, #tpu.memory_space<smem>>
    %377 = vector.broadcast %376 : f32 to vector<16x16xf32>
    %c28_186 = arith.constant 28 : index
    %378 = memref.load %arg4[%c28_186] : memref<32xf32, #tpu.memory_space<smem>>
    %379 = vector.broadcast %378 : f32 to vector<16x16xf32>
    %380 = arith.mulf %60, %379 : vector<16x16xf32>
    %381 = arith.addf %377, %380 : vector<16x16xf32>
    %c29_187 = arith.constant 29 : index
    %382 = memref.load %arg4[%c29_187] : memref<32xf32, #tpu.memory_space<smem>>
    %383 = vector.broadcast %382 : f32 to vector<16x16xf32>
    %384 = arith.mulf %116, %383 : vector<16x16xf32>
    %385 = arith.addf %381, %384 : vector<16x16xf32>
    %c30_188 = arith.constant 30 : index
    %386 = memref.load %arg4[%c30_188] : memref<32xf32, #tpu.memory_space<smem>>
    %387 = vector.broadcast %386 : f32 to vector<16x16xf32>
    %388 = arith.mulf %172, %387 : vector<16x16xf32>
    %389 = arith.addf %385, %388 : vector<16x16xf32>
    %c31_189 = arith.constant 31 : index
    %390 = memref.load %arg4[%c31_189] : memref<32xf32, #tpu.memory_space<smem>>
    %391 = vector.broadcast %390 : f32 to vector<16x16xf32>
    %392 = arith.mulf %228, %391 : vector<16x16xf32>
    %393 = arith.addf %389, %392 : vector<16x16xf32>
    %c0_190 = arith.constant 0 : index
    %c7_191 = arith.constant 7 : index
    %c0_192 = arith.constant 0 : index
    %c0_193 = arith.constant 0 : index
    %394 = vector.load %arg6[%c0_190, %c7_191, %c0_192, %c0_193] : memref<1x8x16x16xf32, #tpu.memory_space<vmem>>, vector<1x1x16x16xf32>
    %395 = vector.shape_cast %394 : vector<1x1x16x16xf32> to vector<16x16xf32>
    %396 = vector.shape_cast %393 : vector<16x16xf32> to vector<1x1x16x16xf32>
    tpu.vector_store %arg6[%c0_190, %c7_191, %c0_192, %c0_193], %396 {strides = array<i32>} : memref<1x8x16x16xf32, #tpu.memory_space<vmem>>, vector<1x1x16x16xf32>,
    return
  }
  func.func @transform_0(%arg0: i32) -> (i32, i32, i32, i32) {
    %c0_i32 = arith.constant 0 : i32
    %c0_i32_0 = arith.constant 0 : i32
    %c0_i32_1 = arith.constant 0 : i32
    %c0_i32_2 = arith.constant 0 : i32
    return %arg0, %c0_i32, %c0_i32_0, %c0_i32_1 : i32, i32, i32, i32
  }
  func.func @transform_1(%arg0: i32) -> i32 {
    %c0_i32 = arith.constant 0 : i32
    %c0_i32_0 = arith.constant 0 : i32
    return %c0_i32 : i32
  }
  func.func @transform_2(%arg0: i32) -> i32 {
    %c0_i32 = arith.constant 0 : i32
    %c0_i32_0 = arith.constant 0 : i32
    return %c0_i32 : i32
  }
  func.func @transform_3(%arg0: i32) -> i32 {
    %c0_i32 = arith.constant 0 : i32
    %c0_i32_0 = arith.constant 0 : i32
    return %c0_i32 : i32
  }
  func.func @transform_4(%arg0: i32) -> i32 {
    %c0_i32 = arith.constant 0 : i32
    %c0_i32_0 = arith.constant 0 : i32
    return %c0_i32 : i32
  }
  func.func @transform_5(%arg0: i32) -> (i32, i32, i32, i32) {
    %c0_i32 = arith.constant 0 : i32
    %c0_i32_0 = arith.constant 0 : i32
    %c0_i32_1 = arith.constant 0 : i32
    %c0_i32_2 = arith.constant 0 : i32
    return %arg0, %c0_i32, %c0_i32_0, %c0_i32_1 : i32, i32, i32, i32
  }
}

</mosaic_0001>

<llo_original>
// kernel: tpu_custom_call.1
$region0: #{tpu_custom_call.1}
  #allocation0 [shape = 'u32[]', space=smem, size = 0x4, offset = 0x4, fixed_abs, tag = 'smem constant byte address 0x4 - core index']
  #allocation1 [shape = 'u32[144,128]{1,0:T(1,128)}', space=vmem, size = 0x12000, scoped, tag = 'internal scratch']
  #allocation2 [shape = 'f32[4,20,20]{2,1,0:T(8,128)}', space=vmem, size = 0xc000, scoped, tag = 'scratch operand']
  %s0 = inlined_call_operand.hbm [shape: f32[2,4,16,16], index: 0, kind: input, shape index: {}]
  %s1 = inlined_call_operand.vmem [shape: f32[36], index: 1, kind: input, shape index: {}]
  %s2 = inlined_call_operand.vmem [shape: f32[4], index: 2, kind: input, shape index: {}]
  %s3 = inlined_call_operand.vmem [shape: f32[32], index: 3, kind: input, shape index: {}]
  %s4 = inlined_call_operand.vmem [shape: f32[8], index: 4, kind: input, shape index: {}]
  %s5 = inlined_call_operand.hbm [shape: f32[2,8,16,16], index: 5, kind: output, shape index: {}]
  %s6 = sld [smem:[#allocation0]]
  $region73: #{tpu_custom_call.1} parent=0
    _
  %s8 = ssub.s32 1, %s6
  %s9 = scalar_select 0, %s8, %s6
  $region1: #{tpu_custom_call.1} parent=0
    #allocation3 [shape = 'u8[65536]{0}', space=vmem, size = 0x10000, scoped, tag = 'input window, operand 0']
    #allocation4 [shape = 's32[2]{0}', space=sflag, size = 0x8, scoped, tag = 'scoped memory for tpu_custom_call.1']
    #allocation5 [shape = 's32[2]{0}', space=sflag, size = 0x8, scoped, tag = 'scoped memory for tpu_custom_call.1']
    #allocation6 [shape = 's32[2]{0}', space=sflag, size = 0x8, scoped, tag = 'scoped memory for tpu_custom_call.1']
    #allocation7 [shape = 'u8[512]{0}', space=smem, size = 0x200, scoped, tag = 'input window, operand 1, single buffered']
    #allocation8 [shape = 'u8[512]{0}', space=smem, size = 0x200, scoped, tag = 'input window, operand 2, single buffered']
    #allocation9 [shape = 's32[1]{0}', space=sflag, size = 0x4, scoped, tag = 'scoped memory for tpu_custom_call.1']
    #allocation10 [shape = 'u8[512]{0}', space=smem, size = 0x200, scoped, tag = 'input window, operand 3, single buffered']
    #allocation11 [shape = 'u8[512]{0}', space=smem, size = 0x200, scoped, tag = 'input window, operand 4, single buffered']
    #allocation12 [shape = 's32[1]{0}', space=sflag, size = 0x4, scoped, tag = 'scoped memory for tpu_custom_call.1']
    #allocation13 [shape = 'u8[131072]{0}', space=vmem, size = 0x20000, scoped, tag = 'output window, operand 0']
    %10 = vsyncpa [#allocation4], 0
    %s11 = scalar_lea.sflag [#allocation4], 1
    %12 = vsyncpa %s11, 0
    %13 = vsyncpa [#allocation6], 0
    %14 = vsyncpa [#allocation9], 0
    %15 = vsyncpa [#allocation12], 0
    %16 = vsyncpa [#allocation5], 0
    %s17 = scalar_lea.sflag [#allocation5], 1
    %18 = vsyncpa %s17, 0
    loop: start=0, step=1, limit=4
    $region2: #{tpu_custom_call.1} parent=1 // loop_pre_header
      _
    $region3: #{tpu_custom_call.1} parent=1 // loop_header
      %s20 = sphi 0, %s24
      %p21 = scmp.ge.s32.totalorder %s20, 4
      %s30 = sphi 0, %s32
      %s33 = sphi 0, %s30
      %s34 = sphi 0, %s33
      %s50 = sphi 0, %s34
      %s54 = sphi 0, %s54
      %s56 = sphi 0, %s54
      %s57 = sphi 0, %s56
      %s71 = sphi 0, %s57
      %s75 = sphi 0, %s75
      %s77 = sphi 0, %s75
      %s78 = sphi 0, %s77
      %s92 = sphi 0, %s78
      %s96 = sphi 0, %s96
      %s98 = sphi 0, %s96
      %s99 = sphi 0, %s98
      %s113 = sphi 0, %s99
      %s117 = sphi 0, %s117
      %s119 = sphi 0, %s117
      %s120 = sphi 0, %s119
      %s134 = sphi 0, %s120
      %s140 = sphi 0, %s142
      %s143 = sphi 0, %s140
      %s144 = sphi 0, %s143
      %s160 = sphi 0, %s144
    $region4: #{tpu_custom_call.1} parent=1 // loop_header_branch
      %23 = sbr.rel (%p21) target = $region8
    $region5: #{tpu_custom_call.1} parent=1 // loop_body
      %s25 = ssub.s32 %s20, 1
      %s26 = ssub.s32 %s20, 2
      %s27 = sadd.s32 %s20, 1
      %s28 = ssub.s32 %s20, %s27
      %p29 = scmp.eq.s32.totalorder %s28, 0
      %s31 = sadd.s32 %s30, 1
      %s32 = scalar_select %p29, %s30, %s31
      %p35 = pneg %p29
      %p36 = scmp.eq.s32.totalorder %s20, 1
      %p37 = por %p35, %p36
      %p38 = scmp.ne.s32.totalorder %s30, %s33
      %p39 = scmp.eq.s32.totalorder %s20, 0
      %p40 = por %p38, %p39
      %p41 = scmp.ne.s32.totalorder %s30, %s33
      %p42 = scmp.eq.s32.totalorder %s25, 1
      %p43 = por %p41, %p42
      %p44 = scmp.ne.s32.totalorder %s33, %s34
      %p45 = scmp.eq.s32.totalorder %s25, 0
      %p46 = por %p44, %p45
      %p47 = scmp.ne.s32.totalorder %s33, %s34
      %p48 = scmp.eq.s32.totalorder %s26, 1
      %p49 = por %p47, %p48
      %p51 = scmp.ne.s32.totalorder %s34, %s50
      %p52 = scmp.eq.s32.totalorder %s26, 0
      %p53 = por %p51, %p52
      %s55 = sadd.s32 %s54, 1
      %p58 = scmp.eq.s32.totalorder %s20, 1
      %p59 = scmp.ne.s32.totalorder %s54, %s56
      %p60 = scmp.eq.s32.totalorder %s20, 0
      %p61 = por %p59, %p60
      %p62 = scmp.ne.s32.totalorder %s54, %s56
      %p63 = scmp.eq.s32.totalorder %s25, 1
      %p64 = por %p62, %p63
      %p65 = scmp.ne.s32.totalorder %s56, %s57
      %p66 = scmp.eq.s32.totalorder %s25, 0
      %p67 = por %p65, %p66
      %p68 = scmp.ne.s32.totalorder %s56, %s57
      %p69 = scmp.eq.s32.totalorder %s26, 1
      %p70 = por %p68, %p69
      %p72 = scmp.ne.s32.totalorder %s57, %s71
      %p73 = scmp.eq.s32.totalorder %s26, 0
      %p74 = por %p72, %p73
      %s76 = sadd.s32 %s75, 1
      %p79 = scmp.eq.s32.totalorder %s20, 1
      %p80 = scmp.ne.s32.totalorder %s75, %s77
      %p81 = scmp.eq.s32.totalorder %s20, 0
      %p82 = por %p80, %p81
      %p83 = scmp.ne.s32.totalorder %s75, %s77
      %p84 = scmp.eq.s32.totalorder %s25, 1
      %p85 = por %p83, %p84
      %p86 = scmp.ne.s32.totalorder %s77, %s78
      %p87 = scmp.eq.s32.totalorder %s25, 0
      %p88 = por %p86, %p87
      %p89 = scmp.ne.s32.totalorder %s77, %s78
      %p90 = scmp.eq.s32.totalorder %s26, 1
      %p91 = por %p89, %p90
      %p93 = scmp.ne.s32.totalorder %s78, %s92
      %p94 = scmp.eq.s32.totalorder %s26, 0
      %p95 = por %p93, %p94
      %s97 = sadd.s32 %s96, 1
      %p100 = scmp.eq.s32.totalorder %s20, 1
      %p101 = scmp.ne.s32.totalorder %s96, %s98
      %p102 = scmp.eq.s32.totalorder %s20, 0
      %p103 = por %p101, %p102
      %p104 = scmp.ne.s32.totalorder %s96, %s98
      %p105 = scmp.eq.s32.totalorder %s25, 1
      %p106 = por %p104, %p105
      %p107 = scmp.ne.s32.totalorder %s98, %s99
      %p108 = scmp.eq.s32.totalorder %s25, 0
      %p109 = por %p107, %p108
      %p110 = scmp.ne.s32.totalorder %s98, %s99
      %p111 = scmp.eq.s32.totalorder %s26, 1
      %p112 = por %p110, %p111
      %p114 = scmp.ne.s32.totalorder %s99, %s113
      %p115 = scmp.eq.s32.totalorder %s26, 0
      %p116 = por %p114, %p115
      %s118 = sadd.s32 %s117, 1
      %p121 = scmp.eq.s32.totalorder %s20, 1
      %p122 = scmp.ne.s32.totalorder %s117, %s119
      %p123 = scmp.eq.s32.totalorder %s20, 0
      %p124 = por %p122, %p123
      %p125 = scmp.ne.s32.totalorder %s117, %s119
      %p126 = scmp.eq.s32.totalorder %s25, 1
      %p127 = por %p125, %p126
      %p128 = scmp.ne.s32.totalorder %s119, %s120
      %p129 = scmp.eq.s32.totalorder %s25, 0
      %p130 = por %p128, %p129
      %p131 = scmp.ne.s32.totalorder %s119, %s120
      %p132 = scmp.eq.s32.totalorder %s26, 1
      %p133 = por %p131, %p132
      %p135 = scmp.ne.s32.totalorder %s120, %s134
      %p136 = scmp.eq.s32.totalorder %s26, 0
      %p137 = por %p135, %p136
      %s138 = ssub.s32 %s20, %s27
      %p139 = scmp.eq.s32.totalorder %s138, 0
      %s141 = sadd.s32 %s140, 1
      %s142 = scalar_select %p139, %s140, %s141
      %p145 = pneg %p139
      %p146 = scmp.eq.s32.totalorder %s20, 1
      %p147 = por %p145, %p146
      %p148 = scmp.ne.s32.totalorder %s140, %s143
      %p149 = scmp.eq.s32.totalorder %s20, 0
      %p150 = por %p148, %p149
      %p151 = scmp.ne.s32.totalorder %s140, %s143
      %p152 = scmp.eq.s32.totalorder %s25, 1
      %p153 = por %p151, %p152
      %p154 = scmp.ne.s32.totalorder %s143, %s144
      %p155 = scmp.eq.s32.totalorder %s25, 0
      %p156 = por %p154, %p155
      %p157 = scmp.ne.s32.totalorder %s143, %s144
      %p158 = scmp.eq.s32.totalorder %s26, 1
      %p159 = por %p157, %p158
      %p161 = scmp.ne.s32.totalorder %s144, %s160
      %p162 = scmp.eq.s32.totalorder %s26, 0
      %p163 = por %p161, %p162
      %p164 = scmp.le.s32.totalorder 1, %s20
      %p165 = scmp.lt.s32.totalorder %s20, 3
      %p166 = pnand %p164, %p165
      %p167 = pneg %p166
      // Predicated region
      $region9: #{tpu_custom_call.1} parent=5 // pred_check
        _
      $region10: #{tpu_custom_call.1} parent=5 // pred_check_branch
        %169 = sbr.rel (%p166) target = $region12
      $region11: #{tpu_custom_call.1} parent=5 // pred_region
        %s170 = ssub.s32 %s20, 1
        // Predicated region
        $region13: #{tpu_custom_call.1} parent=11 // pred_check
          %p171 = pneg %p67
        $region14: #{tpu_custom_call.1} parent=11 // pred_check_branch
          %173 = sbr.rel (%p171) target = $region16
        $region15: #{tpu_custom_call.1} parent=11 // pred_region
          %s175 = ssub.s32 16, 16
          %176 = vsyncadd [#allocation6], %s175
          %s178 = sshll.u32 %s1, 4
          %s179 = int_to_ptr.vmem [resolvable:$true] %s178
          %181 = dma.vmem_to_smem %s179, 16, [#allocation7], [#allocation6]
        $region16: #{tpu_custom_call.1} parent=11 // pred_fallthru
          _
        // Predicated region
        $region17: #{tpu_custom_call.1} parent=11 // pred_check
          %p182 = pneg %p88
        $region18: #{tpu_custom_call.1} parent=11 // pred_check_branch
          %184 = sbr.rel (%p182) target = $region20
        $region19: #{tpu_custom_call.1} parent=11 // pred_region
          %s186 = ssub.s32 16, 16
          %187 = vsyncadd [#allocation9], %s186
          %s189 = sshll.u32 %s2, 4
          %s190 = int_to_ptr.vmem [resolvable:$true] %s189
          %192 = dma.vmem_to_smem %s190, 16, [#allocation8], [#allocation9]
        $region20: #{tpu_custom_call.1} parent=11 // pred_fallthru
          _
        // Predicated region
        $region21: #{tpu_custom_call.1} parent=11 // pred_check
          %p193 = pneg %p109
        $region22: #{tpu_custom_call.1} parent=11 // pred_check_branch
          %195 = sbr.rel (%p193) target = $region24
        $region23: #{tpu_custom_call.1} parent=11 // pred_region
          %s197 = ssub.s32 16, 16
          %198 = vsyncadd [#allocation9], %s197
          %s200 = sshll.u32 %s3, 4
          %s201 = int_to_ptr.vmem [resolvable:$true] %s200
          %203 = dma.vmem_to_smem %s201, 16, [#allocation10], [#allocation9]
        $region24: #{tpu_custom_call.1} parent=11 // pred_fallthru
          _
        // Predicated region
        $region25: #{tpu_custom_call.1} parent=11 // pred_check
          %p204 = pneg %p130
        $region26: #{tpu_custom_call.1} parent=11 // pred_check_branch
          %206 = sbr.rel (%p204) target = $region28
        $region27: #{tpu_custom_call.1} parent=11 // pred_region
          %s208 = ssub.s32 16, 16
          %209 = vsyncadd [#allocation12], %s208
          %s211 = sshll.u32 %s4, 4
          %s212 = int_to_ptr.vmem [resolvable:$true] %s211
          %214 = dma.vmem_to_smem %s212, 16, [#allocation11], [#allocation12]
        $region28: #{tpu_custom_call.1} parent=11 // pred_fallthru
          _
      $region12: #{tpu_custom_call.1} parent=5 // pred_fallthru
        _
      %p215 = scmp.lt.s32.totalorder %s20, 2
      // Predicated region
      $region29: #{tpu_custom_call.1} parent=5 // pred_check
        %p216 = pneg %p215
      $region30: #{tpu_custom_call.1} parent=5 // pred_check_branch
        %218 = sbr.rel (%p216) target = $region32
      $region31: #{tpu_custom_call.1} parent=5 // pred_region
        // Predicated region
        $region33: #{tpu_custom_call.1} parent=31 // pred_check
          %p219 = pneg %p40
        $region34: #{tpu_custom_call.1} parent=31 // pred_check_branch
          %221 = sbr.rel (%p219) target = $region36
        $region35: #{tpu_custom_call.1} parent=31 // pred_region
          %s222 = sand.u32 %s30, 1
          %s223 = scalar_lea.sflag [#allocation4], %s222
          %s224 = sand.u32 %s30, 1
          %s225 = smul.addr %s224, 64
          %s226 = scalar_lea.vmem [#allocation3], %s225
          %s228 = ssub.s32 1024, 1024
          %229 = vsyncadd %s223, %s228
          %s230 = smul.addr %s20, 8
          %s231 = smul.addr %s230, 128
          %s232 = scalar_lea.hbm %s0, %s231
          %s233 = sshll.u32 %s226, 4
          %s234 = int_to_ptr.vmem [resolvable:$true] %s233
          %239 = dma.hbm_to_vmem [thread:$0]  %s232, 1024, %s234, %s223, 128, 128, 8
        $region36: #{tpu_custom_call.1} parent=31 // pred_fallthru
          _
      $region32: #{tpu_custom_call.1} parent=5 // pred_fallthru
        _
      %p240 = scmp.le.s32.totalorder 1, %s20
      %p241 = scmp.lt.s32.totalorder %s20, 3
      %p242 = pnand %p240, %p241
      %p243 = pneg %p242
      // Predicated region
      $region37: #{tpu_custom_call.1} parent=5 // pred_check
        _
      $region38: #{tpu_custom_call.1} parent=5 // pred_check_branch
        %245 = sbr.rel (%p242) target = $region40
      $region39: #{tpu_custom_call.1} parent=5 // pred_region
        %s246 = ssub.s32 %s20, 1
        %s247 = sand.u32 %s33, 1
        %s248 = scalar_lea.sflag [#allocation4], %s247
        %s249 = sand.u32 %s33, 1
        %s250 = smul.addr %s249, 64
        %s251 = scalar_lea.vmem [#allocation3], %s250
        // Predicated region
        $region41: #{tpu_custom_call.1} parent=39 // pred_check
          %p252 = pneg %p46
        $region42: #{tpu_custom_call.1} parent=39 // pred_check_branch
          %254 = sbr.rel (%p252) target = $region44
        $region43: #{tpu_custom_call.1} parent=39 // pred_region
          %255 = dma.done %s248, 1024
        $region44: #{tpu_custom_call.1} parent=39 // pred_fallthru
          _
        // Predicated region
        $region45: #{tpu_custom_call.1} parent=39 // pred_check
          %p256 = pneg %p67
        $region46: #{tpu_custom_call.1} parent=39 // pred_check_branch
          %258 = sbr.rel (%p256) target = $region48
        $region47: #{tpu_custom_call.1} parent=39 // pred_region
          %259 = dma.done [#allocation6], 16
        $region48: #{tpu_custom_call.1} parent=39 // pred_fallthru
          _
        // Predicated region
        $region49: #{tpu_custom_call.1} parent=39 // pred_check
          %p260 = pneg %p88
        $region50: #{tpu_custom_call.1} parent=39 // pred_check_branch
          %262 = sbr.rel (%p260) target = $region52
        $region51: #{tpu_custom_call.1} parent=39 // pred_region
          %263 = dma.done [#allocation9], 16
        $region52: #{tpu_custom_call.1} parent=39 // pred_fallthru
          _
        // Predicated region
        $region53: #{tpu_custom_call.1} parent=39 // pred_check
          %p264 = pneg %p109
        $region54: #{tpu_custom_call.1} parent=39 // pred_check_branch
          %266 = sbr.rel (%p264) target = $region56
        $region55: #{tpu_custom_call.1} parent=39 // pred_region
          %267 = dma.done [#allocation9], 16
        $region56: #{tpu_custom_call.1} parent=39 // pred_fallthru
          _
        // Predicated region
        $region57: #{tpu_custom_call.1} parent=39 // pred_check
          %p268 = pneg %p130
        $region58: #{tpu_custom_call.1} parent=39 // pred_check_branch
          %270 = sbr.rel (%p268) target = $region60
        $region59: #{tpu_custom_call.1} parent=39 // pred_region
          %271 = dma.done [#allocation12], 16
        $region60: #{tpu_custom_call.1} parent=39 // pred_fallthru
          _
        %272 = sfence
        %s273 = sand.u32 %s33, 1
        %s274 = scalar_lea.sflag [#allocation4], %s273
        %s275 = sand.u32 %s33, 1
        %s276 = smul.addr %s275, 64
        %s277 = scalar_lea.vmem [#allocation3], %s276
        %p278 = pneg %p46
        %p279 = pneg %p43
        %p280 = pneg %p67
        %p281 = pneg %p64
        %p282 = pneg %p88
        %p283 = pneg %p85
        %p284 = pneg %p109
        %p285 = pneg %p106
        %p286 = pneg %p130
        %p287 = pneg %p127
        %p288 = pneg %p156
        %p289 = pneg %p153
        %s290 = sand.u32 %s143, 1
        %s291 = scalar_lea.sflag [#allocation5], %s290
        %s292 = sand.u32 %s143, 1
        %s293 = smul.addr %s292, 128
        %s294 = scalar_lea.vmem [#allocation13], %s293
        %vm295 = vcmask 162816
        %296 = vst.msk [vmem:[#allocation2] sm:$0xff] %vm295, 0.0
        %297 = vst.msk [vmem:[#allocation2 + $0x8] sm:$0xff] %vm295, 0.0
        %vm298 = vcmask 158720
        %299 = vst.msk [vmem:[#allocation2 + $0x10] sm:$0xf] %vm298, 0.0
        %300 = vst.msk [vmem:[#allocation2 + $0x18] sm:$0xff] %vm295, 0.0
        %301 = vst.msk [vmem:[#allocation2 + $0x20] sm:$0xff] %vm295, 0.0
        %302 = vst.msk [vmem:[#allocation2 + $0x28] sm:$0xf] %vm298, 0.0
        %303 = vst.msk [vmem:[#allocation2 + $0x30] sm:$0xff] %vm295, 0.0
        %304 = vst.msk [vmem:[#allocation2 + $0x38] sm:$0xff] %vm295, 0.0
        %305 = vst.msk [vmem:[#allocation2 + $0x40] sm:$0xf] %vm298, 0.0
        %306 = vst.msk [vmem:[#allocation2 + $0x48] sm:$0xff] %vm295, 0.0
        %307 = vst.msk [vmem:[#allocation2 + $0x50] sm:$0xff] %vm295, 0.0
        %308 = vst.msk [vmem:[#allocation2 + $0x58] sm:$0xf] %vm298, 0.0
        %v309 = vld [vmem:[%s251] sm:$0xff]
        %v310 = vld [vmem:[%s251 + $0x8] sm:$0xff]
        %v311 = vld [vmem:[%s251 + $0x10] sm:$0xff]
        %v312 = vld [vmem:[%s251 + $0x18] sm:$0xff]
        %v313 = vld [vmem:[%s251 + $0x20] sm:$0xff]
        %v314 = vld [vmem:[%s251 + $0x28] sm:$0xff]
        %v315 = vld [vmem:[%s251 + $0x30] sm:$0xff]
        %v316 = vld [vmem:[%s251 + $0x38] sm:$0xff]
        %325 = vrot.lane.b32.xlu0 %v309, 2
        %v326 = vpop.permute.xlu0 %325
        %327 = vrot.lane.b32.xlu0 %v310, 2
        %v328 = vpop.permute.xlu0 %327
        %329 = vrot.lane.b32.xlu0 %v311, 2
        %v330 = vpop.permute.xlu0 %329
        %331 = vrot.lane.b32.xlu0 %v312, 2
        %v332 = vpop.permute.xlu0 %331
        %333 = vrot.lane.b32.xlu0 %v313, 2
        %v334 = vpop.permute.xlu0 %333
        %335 = vrot.lane.b32.xlu0 %v314, 2
        %v336 = vpop.permute.xlu0 %335
        %337 = vrot.lane.b32.xlu0 %v315, 2
        %v338 = vpop.permute.xlu0 %337
        %339 = vrot.lane.b32.xlu0 %v316, 2
        %v340 = vpop.permute.xlu0 %339
        %vm349 = vcmask 146448
        %350 = vst.msk [vmem:[#allocation2 + $0x2] sm:$0xff] %vm349, %v326
        %351 = vst.msk [vmem:[#allocation2 + $0xa] sm:$0xff] %vm349, %v328
        %352 = vst.msk [vmem:[#allocation2 + $0x1a] sm:$0xff] %vm349, %v330
        %353 = vst.msk [vmem:[#allocation2 + $0x22] sm:$0xff] %vm349, %v332
        %354 = vst.msk [vmem:[#allocation2 + $0x32] sm:$0xff] %vm349, %v334
        %355 = vst.msk [vmem:[#allocation2 + $0x3a] sm:$0xff] %vm349, %v336
        %356 = vst.msk [vmem:[#allocation2 + $0x4a] sm:$0xff] %vm349, %v338
        %357 = vst.msk [vmem:[#allocation2 + $0x52] sm:$0xff] %vm349, %v340
        %s358 = sld [smem:[#allocation8]]
        %v359 = vstv %s358
        %v360 = vld [vmem:[#allocation2] sm:$0xff]
        %v361 = vld [vmem:[#allocation2 + $0x8] sm:$0xff]
        %s362 = sld [smem:[#allocation7]]
        %v363 = vstv %s362
        %v364 = vmul.f32 %v360, %v363
        %v365 = vmul.f32 %v361, %v363
        %v366 = vadd.f32 %v359, %v364
        %v367 = vadd.f32 %v359, %v365
        %s368 = sld [smem:[#allocation7 + $0x1]]
        %v369 = vstv %s368
        %v370 = vmul.f32 %v360, %v369
        %v371 = vmul.f32 %v361, %v369
        %374 = vrot.lane.b32.xlu0 %v370, 126
        %v375 = vpop.permute.xlu0 %374
        %376 = vrot.lane.b32.xlu0 %v371, 126
        %v377 = vpop.permute.xlu0 %376
        %v380 = vadd.f32 %v366, %v375
        %v381 = vadd.f32 %v367, %v377
        %s382 = sld [smem:[#allocation7 + $0x2]]
        %v383 = vstv %s382
        %v384 = vmul.f32 %v360, %v383
        %v385 = vmul.f32 %v361, %v383
        %388 = vrot.lane.b32.xlu0 %v384, 124
        %v389 = vpop.permute.xlu0 %388
        %390 = vrot.lane.b32.xlu0 %v385, 124
        %v391 = vpop.permute.xlu0 %390
        %v394 = vadd.f32 %v380, %v389
        %v395 = vadd.f32 %v381, %v391
        %v396 = vld [vmem:[#allocation2 + $0x2] sm:$0xff]
        %v397 = vld [vmem:[#allocation2 + $0xa] sm:$0xff]
        %s398 = sld [smem:[#allocation7 + $0x3]]
        %v399 = vstv %s398
        %v400 = vmul.f32 %v396, %v399
        %v401 = vmul.f32 %v397, %v399
        %v402 = vadd.f32 %v394, %v400
        %v403 = vadd.f32 %v395, %v401
        %s404 = sld [smem:[#allocation7 + $0x4]]
        %v405 = vstv %s404
        %v406 = vmul.f32 %v396, %v405
        %v407 = vmul.f32 %v397, %v405
        %410 = vrot.lane.b32.xlu0 %v406, 126
        %v411 = vpop.permute.xlu0 %410
        %412 = vrot.lane.b32.xlu0 %v407, 126
        %v413 = vpop.permute.xlu0 %412
        %v416 = vadd.f32 %v402, %v411
        %v417 = vadd.f32 %v403, %v413
        %s418 = sld [smem:[#allocation7 + $0x5]]
        %v419 = vstv %s418
        %v420 = vmul.f32 %v396, %v419
        %v421 = vmul.f32 %v397, %v419
        %424 = vrot.lane.b32.xlu0 %v420, 124
        %v425 = vpop.permute.xlu0 %424
        %426 = vrot.lane.b32.xlu0 %v421, 124
        %v427 = vpop.permute.xlu0 %426
        %v430 = vadd.f32 %v416, %v425
        %v431 = vadd.f32 %v417, %v427
        %v432 = vld [vmem:[#allocation2 + $0x4] sm:$0xff]
        %v433 = vld [vmem:[#allocation2 + $0xc] sm:$0xff]
        %s434 = sld [smem:[#allocation7 + $0x6]]
        %v435 = vstv %s434
        %v436 = vmul.f32 %v432, %v435
        %v437 = vmul.f32 %v433, %v435
        %v438 = vadd.f32 %v430, %v436
        %v439 = vadd.f32 %v431, %v437
        %s440 = sld [smem:[#allocation7 + $0x7]]
        %v441 = vstv %s440
        %v442 = vmul.f32 %v432, %v441
        %v443 = vmul.f32 %v433, %v441
        %446 = vrot.lane.b32.xlu0 %v442, 126
        %v447 = vpop.permute.xlu0 %446
        %448 = vrot.lane.b32.xlu0 %v443, 126
        %v449 = vpop.permute.xlu0 %448
        %v452 = vadd.f32 %v438, %v447
        %v453 = vadd.f32 %v439, %v449
        %s454 = sld [smem:[#allocation7 + $0x8]]
        %v455 = vstv %s454
        %v456 = vmul.f32 %v432, %v455
        %v457 = vmul.f32 %v433, %v455
        %460 = vrot.lane.b32.xlu0 %v456, 124
        %v461 = vpop.permute.xlu0 %460
        %462 = vrot.lane.b32.xlu0 %v457, 124
        %v463 = vpop.permute.xlu0 %462
        %v466 = vadd.f32 %v452, %v461
        %v467 = vadd.f32 %v453, %v463
        %s468 = sld [smem:[#allocation8 + $0x1]]
        %v469 = vstv %s468
        %s470 = scalar_lea.vmem [#allocation2], 24
        %v471 = vld [vmem:[%s470] sm:$0xff]
        %v472 = vld [vmem:[%s470 + $0x8] sm:$0xff]
        %s473 = sld [smem:[#allocation7 + $0x9]]
        %v474 = vstv %s473
        %v475 = vmul.f32 %v471, %v474
        %v476 = vmul.f32 %v472, %v474
        %v477 = vadd.f32 %v469, %v475
        %v478 = vadd.f32 %v469, %v476
        %s479 = sld [smem:[#allocation7 + $0xa]]
        %v480 = vstv %s479
        %v481 = vmul.f32 %v471, %v480
        %v482 = vmul.f32 %v472, %v480
        %485 = vrot.lane.b32.xlu0 %v481, 126
        %v486 = vpop.permute.xlu0 %485
        %487 = vrot.lane.b32.xlu0 %v482, 126
        %v488 = vpop.permute.xlu0 %487
        %v491 = vadd.f32 %v477, %v486
        %v492 = vadd.f32 %v478, %v488
        %s493 = sld [smem:[#allocation7 + $0xb]]
        %v494 = vstv %s493
        %v495 = vmul.f32 %v471, %v494
        %v496 = vmul.f32 %v472, %v494
        %499 = vrot.lane.b32.xlu0 %v495, 124
        %v500 = vpop.permute.xlu0 %499
        %501 = vrot.lane.b32.xlu0 %v496, 124
        %v502 = vpop.permute.xlu0 %501
        %v505 = vadd.f32 %v491, %v500
        %v506 = vadd.f32 %v492, %v502
        %v507 = vld [vmem:[%s470 + $0x2] sm:$0xff]
        %v508 = vld [vmem:[%s470 + $0xa] sm:$0xff]
        %s509 = sld [smem:[#allocation7 + $0xc]]
        %v510 = vstv %s509
        %v511 = vmul.f32 %v507, %v510
        %v512 = vmul.f32 %v508, %v510
        %v513 = vadd.f32 %v505, %v511
        %v514 = vadd.f32 %v506, %v512
        %s515 = sld [smem:[#allocation7 + $0xd]]
        %v516 = vstv %s515
        %v517 = vmul.f32 %v507, %v516
        %v518 = vmul.f32 %v508, %v516
        %521 = vrot.lane.b32.xlu0 %v517, 126
        %v522 = vpop.permute.xlu0 %521
        %523 = vrot.lane.b32.xlu0 %v518, 126
        %v524 = vpop.permute.xlu0 %523
        %v527 = vadd.f32 %v513, %v522
        %v528 = vadd.f32 %v514, %v524
        %s529 = sld [smem:[#allocation7 + $0xe]]
        %v530 = vstv %s529
        %v531 = vmul.f32 %v507, %v530
        %v532 = vmul.f32 %v508, %v530
        %535 = vrot.lane.b32.xlu0 %v531, 124
        %v536 = vpop.permute.xlu0 %535
        %537 = vrot.lane.b32.xlu0 %v532, 124
        %v538 = vpop.permute.xlu0 %537
        %v541 = vadd.f32 %v527, %v536
        %v542 = vadd.f32 %v528, %v538
        %v543 = vld [vmem:[%s470 + $0x4] sm:$0xff]
        %v544 = vld [vmem:[%s470 + $0xc] sm:$0xff]
        %s545 = sld [smem:[#allocation7 + $0xf]]
        %v546 = vstv %s545
        %v547 = vmul.f32 %v543, %v546
        %v548 = vmul.f32 %v544, %v546
        %v549 = vadd.f32 %v541, %v547
        %v550 = vadd.f32 %v542, %v548
        %s551 = sld [smem:[#allocation7 + $0x10]]
        %v552 = vstv %s551
        %v553 = vmul.f32 %v543, %v552
        %v554 = vmul.f32 %v544, %v552
        %557 = vrot.lane.b32.xlu0 %v553, 126
        %v558 = vpop.permute.xlu0 %557
        %559 = vrot.lane.b32.xlu0 %v554, 126
        %v560 = vpop.permute.xlu0 %559
        %v563 = vadd.f32 %v549, %v558
        %v564 = vadd.f32 %v550, %v560
        %s565 = sld [smem:[#allocation7 + $0x11]]
        %v566 = vstv %s565
        %v567 = vmul.f32 %v543, %v566
        %v568 = vmul.f32 %v544, %v566
        %571 = vrot.lane.b32.xlu0 %v567, 124
        %v572 = vpop.permute.xlu0 %571
        %573 = vrot.lane.b32.xlu0 %v568, 124
        %v574 = vpop.permute.xlu0 %573
        %v577 = vadd.f32 %v563, %v572
        %v578 = vadd.f32 %v564, %v574
        %s579 = sld [smem:[#allocation8 + $0x2]]
        %v580 = vstv %s579
        %s581 = scalar_lea.vmem [#allocation2], 48
        %v582 = vld [vmem:[%s581] sm:$0xff]
        %v583 = vld [vmem:[%s581 + $0x8] sm:$0xff]
        %s584 = sld [smem:[#allocation7 + $0x12]]
        %v585 = vstv %s584
        %v586 = vmul.f32 %v582, %v585
        %v587 = vmul.f32 %v583, %v585
        %v588 = vadd.f32 %v580, %v586
        %v589 = vadd.f32 %v580, %v587
        %s590 = sld [smem:[#allocation7 + $0x13]]
        %v591 = vstv %s590
        %v592 = vmul.f32 %v582, %v591
        %v593 = vmul.f32 %v583, %v591
        %596 = vrot.lane.b32.xlu0 %v592, 126
        %v597 = vpop.permute.xlu0 %596
        %598 = vrot.lane.b32.xlu0 %v593, 126
        %v599 = vpop.permute.xlu0 %598
        %v602 = vadd.f32 %v588, %v597
        %v603 = vadd.f32 %v589, %v599
        %s604 = sld [smem:[#allocation7 + $0x14]]
        %v605 = vstv %s604
        %v606 = vmul.f32 %v582, %v605
        %v607 = vmul.f32 %v583, %v605
        %610 = vrot.lane.b32.xlu0 %v606, 124
        %v611 = vpop.permute.xlu0 %610
        %612 = vrot.lane.b32.xlu0 %v607, 124
        %v613 = vpop.permute.xlu0 %612
        %v616 = vadd.f32 %v602, %v611
        %v617 = vadd.f32 %v603, %v613
        %v618 = vld [vmem:[%s581 + $0x2] sm:$0xff]
        %v619 = vld [vmem:[%s581 + $0xa] sm:$0xff]
        %s620 = sld [smem:[#allocation7 + $0x15]]
        %v621 = vstv %s620
        %v622 = vmul.f32 %v618, %v621
        %v623 = vmul.f32 %v619, %v621
        %v624 = vadd.f32 %v616, %v622
        %v625 = vadd.f32 %v617, %v623
        %s626 = sld [smem:[#allocation7 + $0x16]]
        %v627 = vstv %s626
        %v628 = vmul.f32 %v618, %v627
        %v629 = vmul.f32 %v619, %v627
        %632 = vrot.lane.b32.xlu0 %v628, 126
        %v633 = vpop.permute.xlu0 %632
        %634 = vrot.lane.b32.xlu0 %v629, 126
        %v635 = vpop.permute.xlu0 %634
        %v638 = vadd.f32 %v624, %v633
        %v639 = vadd.f32 %v625, %v635
        %s640 = sld [smem:[#allocation7 + $0x17]]
        %v641 = vstv %s640
        %v642 = vmul.f32 %v618, %v641
        %v643 = vmul.f32 %v619, %v641
        %646 = vrot.lane.b32.xlu0 %v642, 124
        %v647 = vpop.permute.xlu0 %646
        %648 = vrot.lane.b32.xlu0 %v643, 124
        %v649 = vpop.permute.xlu0 %648
        %v652 = vadd.f32 %v638, %v647
        %v653 = vadd.f32 %v639, %v649
        %v654 = vld [vmem:[%s581 + $0x4] sm:$0xff]
        %v655 = vld [vmem:[%s581 + $0xc] sm:$0xff]
        %s656 = sld [smem:[#allocation7 + $0x18]]
        %v657 = vstv %s656
        %v658 = vmul.f32 %v654, %v657
        %v659 = vmul.f32 %v655, %v657
        %v660 = vadd.f32 %v652, %v658
        %v661 = vadd.f32 %v653, %v659
        %s662 = sld [smem:[#allocation7 + $0x19]]
        %v663 = vstv %s662
        %v664 = vmul.f32 %v654, %v663
        %v665 = vmul.f32 %v655, %v663
        %668 = vrot.lane.b32.xlu0 %v664, 126
        %v669 = vpop.permute.xlu0 %668
        %670 = vrot.lane.b32.xlu0 %v665, 126
        %v671 = vpop.permute.xlu0 %670
        %v674 = vadd.f32 %v660, %v669
        %v675 = vadd.f32 %v661, %v671
        %s676 = sld [smem:[#allocation7 + $0x1a]]
        %v677 = vstv %s676
        %v678 = vmul.f32 %v654, %v677
        %v679 = vmul.f32 %v655, %v677
        %682 = vrot.lane.b32.xlu0 %v678, 124
        %v683 = vpop.permute.xlu0 %682
        %684 = vrot.lane.b32.xlu0 %v679, 124
        %v685 = vpop.permute.xlu0 %684
        %v688 = vadd.f32 %v674, %v683
        %v689 = vadd.f32 %v675, %v685
        %s690 = sld [smem:[#allocation8 + $0x3]]
        %v691 = vstv %s690
        %s692 = scalar_lea.vmem [#allocation2], 72
        %v693 = vld [vmem:[%s692] sm:$0xff]
        %v694 = vld [vmem:[%s692 + $0x8] sm:$0xff]
        %s695 = sld [smem:[#allocation7 + $0x1b]]
        %v696 = vstv %s695
        %v697 = vmul.f32 %v693, %v696
        %v698 = vmul.f32 %v694, %v696
        %v699 = vadd.f32 %v691, %v697
        %v700 = vadd.f32 %v691, %v698
        %s701 = sld [smem:[#allocation7 + $0x1c]]
        %v702 = vstv %s701
        %v703 = vmul.f32 %v693, %v702
        %v704 = vmul.f32 %v694, %v702
        %707 = vrot.lane.b32.xlu0 %v703, 126
        %v708 = vpop.permute.xlu0 %707
        %709 = vrot.lane.b32.xlu0 %v704, 126
        %v710 = vpop.permute.xlu0 %709
        %v713 = vadd.f32 %v699, %v708
        %v714 = vadd.f32 %v700, %v710
        %s715 = sld [smem:[#allocation7 + $0x1d]]
        %v716 = vstv %s715
        %v717 = vmul.f32 %v693, %v716
        %v718 = vmul.f32 %v694, %v716
        %721 = vrot.lane.b32.xlu0 %v717, 124
        %v722 = vpop.permute.xlu0 %721
        %723 = vrot.lane.b32.xlu0 %v718, 124
        %v724 = vpop.permute.xlu0 %723
        %v727 = vadd.f32 %v713, %v722
        %v728 = vadd.f32 %v714, %v724
        %v729 = vld [vmem:[%s692 + $0x2] sm:$0xff]
        %v730 = vld [vmem:[%s692 + $0xa] sm:$0xff]
        %s731 = sld [smem:[#allocation7 + $0x1e]]
        %v732 = vstv %s731
        %v733 = vmul.f32 %v729, %v732
        %v734 = vmul.f32 %v730, %v732
        %v735 = vadd.f32 %v727, %v733
        %v736 = vadd.f32 %v728, %v734
        %s737 = sld [smem:[#allocation7 + $0x1f]]
        %v738 = vstv %s737
        %v739 = vmul.f32 %v729, %v738
        %v740 = vmul.f32 %v730, %v738
        %743 = vrot.lane.b32.xlu0 %v739, 126
        %v744 = vpop.permute.xlu0 %743
        %745 = vrot.lane.b32.xlu0 %v740, 126
        %v746 = vpop.permute.xlu0 %745
        %v749 = vadd.f32 %v735, %v744
        %v750 = vadd.f32 %v736, %v746
        %s751 = sld [smem:[#allocation7 + $0x20]]
        %v752 = vstv %s751
        %v753 = vmul.f32 %v729, %v752
        %v754 = vmul.f32 %v730, %v752
        %757 = vrot.lane.b32.xlu0 %v753, 124
        %v758 = vpop.permute.xlu0 %757
        %759 = vrot.lane.b32.xlu0 %v754, 124
        %v760 = vpop.permute.xlu0 %759
        %v763 = vadd.f32 %v749, %v758
        %v764 = vadd.f32 %v750, %v760
        %v765 = vld [vmem:[%s692 + $0x4] sm:$0xff]
        %v766 = vld [vmem:[%s692 + $0xc] sm:$0xff]
        %s767 = sld [smem:[#allocation7 + $0x21]]
        %v768 = vstv %s767
        %v769 = vmul.f32 %v765, %v768
        %v770 = vmul.f32 %v766, %v768
        %v771 = vadd.f32 %v763, %v769
        %v772 = vadd.f32 %v764, %v770
        %s773 = sld [smem:[#allocation7 + $0x22]]
        %v774 = vstv %s773
        %v775 = vmul.f32 %v765, %v774
        %v776 = vmul.f32 %v766, %v774
        %779 = vrot.lane.b32.xlu0 %v775, 126
        %v780 = vpop.permute.xlu0 %779
        %781 = vrot.lane.b32.xlu0 %v776, 126
        %v782 = vpop.permute.xlu0 %781
        %v785 = vadd.f32 %v771, %v780
        %v786 = vadd.f32 %v772, %v782
        %s787 = sld [smem:[#allocation7 + $0x23]]
        %v788 = vstv %s787
        %v789 = vmul.f32 %v765, %v788
        %v790 = vmul.f32 %v766, %v788
        %793 = vrot.lane.b32.xlu0 %v789, 124
        %v794 = vpop.permute.xlu0 %793
        %795 = vrot.lane.b32.xlu0 %v790, 124
        %v796 = vpop.permute.xlu0 %795
        %v799 = vadd.f32 %v785, %v794
        %v800 = vadd.f32 %v786, %v796
        %s801 = sld [smem:[#allocation11]]
        %v802 = vstv %s801
        %s803 = sld [smem:[#allocation10]]
        %v804 = vstv %s803
        %v805 = vmul.f32 %v466, %v804
        %v806 = vmul.f32 %v467, %v804
        %v807 = vadd.f32 %v802, %v805
        %v808 = vadd.f32 %v802, %v806
        %s809 = sld [smem:[#allocation10 + $0x1]]
        %v810 = vstv %s809
        %v811 = vmul.f32 %v577, %v810
        %v812 = vmul.f32 %v578, %v810
        %v813 = vadd.f32 %v807, %v811
        %v814 = vadd.f32 %v808, %v812
        %s815 = sld [smem:[#allocation10 + $0x2]]
        %v816 = vstv %s815
        %v817 = vmul.f32 %v688, %v816
        %v818 = vmul.f32 %v689, %v816
        %v819 = vadd.f32 %v813, %v817
        %v820 = vadd.f32 %v814, %v818
        %s821 = sld [smem:[#allocation10 + $0x3]]
        %v822 = vstv %s821
        %v823 = vmul.f32 %v799, %v822
        %v824 = vmul.f32 %v800, %v822
        %v825 = vadd.f32 %v819, %v823
        %v826 = vadd.f32 %v820, %v824
        %vm827 = vcmask 130048
        %828 = vst.msk [vmem:[%s294] sm:$0xff] %vm827, %v825
        %829 = vst.msk [vmem:[%s294 + $0x8] sm:$0xff] %vm827, %v826
        %s830 = sld [smem:[#allocation11 + $0x1]]
        %v831 = vstv %s830
        %s832 = sld [smem:[#allocation10 + $0x4]]
        %v833 = vstv %s832
        %v834 = vmul.f32 %v466, %v833
        %v835 = vmul.f32 %v467, %v833
        %v836 = vadd.f32 %v831, %v834
        %v837 = vadd.f32 %v831, %v835
        %s838 = sld [smem:[#allocation10 + $0x5]]
        %v839 = vstv %s838
        %v840 = vmul.f32 %v577, %v839
        %v841 = vmul.f32 %v578, %v839
        %v842 = vadd.f32 %v836, %v840
        %v843 = vadd.f32 %v837, %v841
        %s844 = sld [smem:[#allocation10 + $0x6]]
        %v845 = vstv %s844
        %v846 = vmul.f32 %v688, %v845
        %v847 = vmul.f32 %v689, %v845
        %v848 = vadd.f32 %v842, %v846
        %v849 = vadd.f32 %v843, %v847
        %s850 = sld [smem:[#allocation10 + $0x7]]
        %v851 = vstv %s850
        %v852 = vmul.f32 %v799, %v851
        %v853 = vmul.f32 %v800, %v851
        %v854 = vadd.f32 %v848, %v852
        %v855 = vadd.f32 %v849, %v853
        %s856 = scalar_lea.vmem %s294, 16 [#allocation13]
        %857 = vst.msk [vmem:[%s856] sm:$0xff] %vm827, %v854
        %858 = vst.msk [vmem:[%s856 + $0x8] sm:$0xff] %vm827, %v855
        %s859 = sld [smem:[#allocation11 + $0x2]]
        %v860 = vstv %s859
        %s861 = sld [smem:[#allocation10 + $0x8]]
        %v862 = vstv %s861
        %v863 = vmul.f32 %v466, %v862
        %v864 = vmul.f32 %v467, %v862
        %v865 = vadd.f32 %v860, %v863
        %v866 = vadd.f32 %v860, %v864
        %s867 = sld [smem:[#allocation10 + $0x9]]
        %v868 = vstv %s867
        %v869 = vmul.f32 %v577, %v868
        %v870 = vmul.f32 %v578, %v868
        %v871 = vadd.f32 %v865, %v869
        %v872 = vadd.f32 %v866, %v870
        %s873 = sld [smem:[#allocation10 + $0xa]]
        %v874 = vstv %s873
        %v875 = vmul.f32 %v688, %v874
        %v876 = vmul.f32 %v689, %v874
        %v877 = vadd.f32 %v871, %v875
        %v878 = vadd.f32 %v872, %v876
        %s879 = sld [smem:[#allocation10 + $0xb]]
        %v880 = vstv %s879
        %v881 = vmul.f32 %v799, %v880
        %v882 = vmul.f32 %v800, %v880
        %v883 = vadd.f32 %v877, %v881
        %v884 = vadd.f32 %v878, %v882
        %s885 = scalar_lea.vmem %s294, 32 [#allocation13]
        %886 = vst.msk [vmem:[%s885] sm:$0xff] %vm827, %v883
        %887 = vst.msk [vmem:[%s885 + $0x8] sm:$0xff] %vm827, %v884
        %s888 = sld [smem:[#allocation11 + $0x3]]
        %v889 = vstv %s888
        %s890 = sld [smem:[#allocation10 + $0xc]]
        %v891 = vstv %s890
        %v892 = vmul.f32 %v466, %v891
        %v893 = vmul.f32 %v467, %v891
        %v894 = vadd.f32 %v889, %v892
        %v895 = vadd.f32 %v889, %v893
        %s896 = sld [smem:[#allocation10 + $0xd]]
        %v897 = vstv %s896
        %v898 = vmul.f32 %v577, %v897
        %v899 = vmul.f32 %v578, %v897
        %v900 = vadd.f32 %v894, %v898
        %v901 = vadd.f32 %v895, %v899
        %s902 = sld [smem:[#allocation10 + $0xe]]
        %v903 = vstv %s902
        %v904 = vmul.f32 %v688, %v903
        %v905 = vmul.f32 %v689, %v903
        %v906 = vadd.f32 %v900, %v904
        %v907 = vadd.f32 %v901, %v905
        %s908 = sld [smem:[#allocation10 + $0xf]]
        %v909 = vstv %s908
        %v910 = vmul.f32 %v799, %v909
        %v911 = vmul.f32 %v800, %v909
        %v912 = vadd.f32 %v906, %v910
        %v913 = vadd.f32 %v907, %v911
        %s914 = scalar_lea.vmem %s294, 48 [#allocation13]
        %915 = vst.msk [vmem:[%s914] sm:$0xff] %vm827, %v912
        %916 = vst.msk [vmem:[%s914 + $0x8] sm:$0xff] %vm827, %v913
        %s917 = sld [smem:[#allocation11 + $0x4]]
        %v918 = vstv %s917
        %s919 = sld [smem:[#allocation10 + $0x10]]
        %v920 = vstv %s919
        %v921 = vmul.f32 %v466, %v920
        %v922 = vmul.f32 %v467, %v920
        %v923 = vadd.f32 %v918, %v921
        %v924 = vadd.f32 %v918, %v922
        %s925 = sld [smem:[#allocation10 + $0x11]]
        %v926 = vstv %s925
        %v927 = vmul.f32 %v577, %v926
        %v928 = vmul.f32 %v578, %v926
        %v929 = vadd.f32 %v923, %v927
        %v930 = vadd.f32 %v924, %v928
        %s931 = sld [smem:[#allocation10 + $0x12]]
        %v932 = vstv %s931
        %v933 = vmul.f32 %v688, %v932
        %v934 = vmul.f32 %v689, %v932
        %v935 = vadd.f32 %v929, %v933
        %v936 = vadd.f32 %v930, %v934
        %s937 = sld [smem:[#allocation10 + $0x13]]
        %v938 = vstv %s937
        %v939 = vmul.f32 %v799, %v938
        %v940 = vmul.f32 %v800, %v938
        %v941 = vadd.f32 %v935, %v939
        %v942 = vadd.f32 %v936, %v940
        %s943 = scalar_lea.vmem %s294, 64 [#allocation13]
        %944 = vst.msk [vmem:[%s943] sm:$0xff] %vm827, %v941
        %945 = vst.msk [vmem:[%s943 + $0x8] sm:$0xff] %vm827, %v942
        %s946 = sld [smem:[#allocation11 + $0x5]]
        %v947 = vstv %s946
        %s948 = sld [smem:[#allocation10 + $0x14]]
        %v949 = vstv %s948
        %v950 = vmul.f32 %v466, %v949
        %v951 = vmul.f32 %v467, %v949
        %v952 = vadd.f32 %v947, %v950
        %v953 = vadd.f32 %v947, %v951
        %s954 = sld [smem:[#allocation10 + $0x15]]
        %v955 = vstv %s954
        %v956 = vmul.f32 %v577, %v955
        %v957 = vmul.f32 %v578, %v955
        %v958 = vadd.f32 %v952, %v956
        %v959 = vadd.f32 %v953, %v957
        %s960 = sld [smem:[#allocation10 + $0x16]]
        %v961 = vstv %s960
        %v962 = vmul.f32 %v688, %v961
        %v963 = vmul.f32 %v689, %v961
        %v964 = vadd.f32 %v958, %v962
        %v965 = vadd.f32 %v959, %v963
        %s966 = sld [smem:[#allocation10 + $0x17]]
        %v967 = vstv %s966
        %v968 = vmul.f32 %v799, %v967
        %v969 = vmul.f32 %v800, %v967
        %v970 = vadd.f32 %v964, %v968
        %v971 = vadd.f32 %v965, %v969
        %s972 = scalar_lea.vmem %s294, 80 [#allocation13]
        %973 = vst.msk [vmem:[%s972] sm:$0xff] %vm827, %v970
        %974 = vst.msk [vmem:[%s972 + $0x8] sm:$0xff] %vm827, %v971
        %s975 = sld [smem:[#allocation11 + $0x6]]
        %v976 = vstv %s975
        %s977 = sld [smem:[#allocation10 + $0x18]]
        %v978 = vstv %s977
        %v979 = vmul.f32 %v466, %v978
        %v980 = vmul.f32 %v467, %v978
        %v981 = vadd.f32 %v976, %v979
        %v982 = vadd.f32 %v976, %v980
        %s983 = sld [smem:[#allocation10 + $0x19]]
        %v984 = vstv %s983
        %v985 = vmul.f32 %v577, %v984
        %v986 = vmul.f32 %v578, %v984
        %v987 = vadd.f32 %v981, %v985
        %v988 = vadd.f32 %v982, %v986
        %s989 = sld [smem:[#allocation10 + $0x1a]]
        %v990 = vstv %s989
        %v991 = vmul.f32 %v688, %v990
        %v992 = vmul.f32 %v689, %v990
        %v993 = vadd.f32 %v987, %v991
        %v994 = vadd.f32 %v988, %v992
        %s995 = sld [smem:[#allocation10 + $0x1b]]
        %v996 = vstv %s995
        %v997 = vmul.f32 %v799, %v996
        %v998 = vmul.f32 %v800, %v996
        %v999 = vadd.f32 %v993, %v997
        %v1000 = vadd.f32 %v994, %v998
        %s1001 = scalar_lea.vmem %s294, 96 [#allocation13]
        %1002 = vst.msk [vmem:[%s1001] sm:$0xff] %vm827, %v999
        %1003 = vst.msk [vmem:[%s1001 + $0x8] sm:$0xff] %vm827, %v1000
        %s1004 = sld [smem:[#allocation11 + $0x7]]
        %v1005 = vstv %s1004
        %s1006 = sld [smem:[#allocation10 + $0x1c]]
        %v1007 = vstv %s1006
        %v1008 = vmul.f32 %v466, %v1007
        %v1009 = vmul.f32 %v467, %v1007
        %v1010 = vadd.f32 %v1005, %v1008
        %v1011 = vadd.f32 %v1005, %v1009
        %s1012 = sld [smem:[#allocation10 + $0x1d]]
        %v1013 = vstv %s1012
        %v1014 = vmul.f32 %v577, %v1013
        %v1015 = vmul.f32 %v578, %v1013
        %v1016 = vadd.f32 %v1010, %v1014
        %v1017 = vadd.f32 %v1011, %v1015
        %s1018 = sld [smem:[#allocation10 + $0x1e]]
        %v1019 = vstv %s1018
        %v1020 = vmul.f32 %v688, %v1019
        %v1021 = vmul.f32 %v689, %v1019
        %v1022 = vadd.f32 %v1016, %v1020
        %v1023 = vadd.f32 %v1017, %v1021
        %s1024 = sld [smem:[#allocation10 + $0x1f]]
        %v1025 = vstv %s1024
        %v1026 = vmul.f32 %v799, %v1025
        %v1027 = vmul.f32 %v800, %v1025
        %v1028 = vadd.f32 %v1022, %v1026
        %v1029 = vadd.f32 %v1023, %v1027
        %s1030 = scalar_lea.vmem %s294, 112 [#allocation13]
        %1031 = vst.msk [vmem:[%s1030] sm:$0xff] %vm827, %v1028
        %1032 = vst.msk [vmem:[%s1030 + $0x8] sm:$0xff] %vm827, %v1029
        %s1033 = sand.u32 %s143, 1
        %s1034 = scalar_lea.sflag [#allocation5], %s1033
        %s1035 = sand.u32 %s143, 1
        %s1036 = smul.addr %s1035, 128
        %s1037 = scalar_lea.vmem [#allocation13], %s1036
        // Predicated region
        $region61: #{tpu_custom_call.1} parent=39 // pred_check
          %p1038 = pneg %p153
        $region62: #{tpu_custom_call.1} parent=39 // pred_check_branch
          %1040 = sbr.rel (%p1038) target = $region64
        $region63: #{tpu_custom_call.1} parent=39 // pred_region
          %s1042 = ssub.s32 2048, 2048
          %1043 = vsyncadd %s1034, %s1042
          %s1044 = smul.addr %s25, 16
          %s1045 = smul.addr %s1044, 128
          %s1046 = scalar_lea.hbm %s5, %s1045
          %s1047 = sshll.u32 %s1037, 4
          %s1048 = int_to_ptr.vmem [resolvable:$true] %s1047
          %1053 = dma.vmem_to_hbm [thread:$0]  %s1048, 2048, %s1046, %s1034, 128, 128, 8
        $region64: #{tpu_custom_call.1} parent=39 // pred_fallthru
          _
      $region40: #{tpu_custom_call.1} parent=5 // pred_fallthru
        _
      %p1054 = scmp.le.s32.totalorder 2, %s20
      // Predicated region
      $region65: #{tpu_custom_call.1} parent=5 // pred_check
        %p1055 = pneg %p1054
      $region66: #{tpu_custom_call.1} parent=5 // pred_check_branch
        %1057 = sbr.rel (%p1055) target = $region68
      $region67: #{tpu_custom_call.1} parent=5 // pred_region
        %s1058 = ssub.s32 %s20, 2
        // Predicated region
        $region69: #{tpu_custom_call.1} parent=67 // pred_check
          %p1059 = pneg %p159
        $region70: #{tpu_custom_call.1} parent=67 // pred_check_branch
          %1061 = sbr.rel (%p1059) target = $region72
        $region71: #{tpu_custom_call.1} parent=67 // pred_region
          %s1062 = sand.u32 %s144, 1
          %s1063 = scalar_lea.sflag [#allocation5], %s1062
          %s1064 = sand.u32 %s144, 1
          %s1065 = smul.addr %s1064, 128
          %s1066 = scalar_lea.vmem [#allocation13], %s1065
          %1067 = dma.done %s1063, 2048
        $region72: #{tpu_custom_call.1} parent=67 // pred_fallthru
          _
      $region68: #{tpu_custom_call.1} parent=5 // pred_fallthru
        _
    $region6: #{tpu_custom_call.1} parent=1 // loop_footer
      %s24 = sadd.s32 1, %s20
    $region7: #{tpu_custom_call.1} parent=1 // loop_footer_branch
      %19 = sbr.rel target = $region3
    $region8: #{tpu_custom_call.1} parent=1 // loop_exit
      _
    %1068 = vsyncpa [#allocation4], 1
    %s1069 = scalar_lea.sflag [#allocation4], 1
    %1070 = vsyncpa %s1069, 1
    %1071 = vsyncpa [#allocation5], 1
    %s1072 = scalar_lea.sflag [#allocation5], 1
    %1073 = vsyncpa %s1072, 1
    %1074 = vsyncpa [#allocation6], 1
    %s1075 = scalar_lea.sflag [#allocation6], 1
    %1076 = vsyncpa %s1075, 1
    %1077 = vsyncpa [#allocation9], 1
    %1078 = vsyncpa [#allocation12], 1

</llo_original>
